<compile_context>
chip_gen: v5e
topology: v5e:2x2
jax: 0.10.0
libtpu: 0.0.40
codegen_flags: <defaults>
</compile_context>

<pallas_src>
import functools

import numpy as np

import jax
import jax.numpy as jnp
from jax.experimental import pallas as pl
from jax.experimental.pallas import tpu as pltpu


# ---------------------------------------------------------------------------
# VMEM budgeting / tiling helpers
# ---------------------------------------------------------------------------

_MIB = 1024 * 1024


def _round_up(x, m):
    return ((x + m - 1) // m) * m


def _vmem_budget_bytes():
    """Per-call working-set budget, gated on the chip's physical VMEM."""
    try:
        info = pltpu.get_tpu_info()
        cap = int(getattr(info, "vmem_capacity_bytes", 128 * _MIB))
    except Exception:
        cap = 64 * _MIB                          # unknown chip: be conservative
    # v5e/v6e (128 MiB) -> 24 MiB; v7x (64 MiB) -> ~12 MiB; smaller chips scale down.
    return int(min(max(cap // 5, 2 * _MIB), 24 * _MIB))


def _compiler_params(semantics, budget):
    """dimension_semantics + a scoped-VMEM limit that matches the tiler's budget."""
    limit = 2 * budget + 2 * _MIB                # tiler already accounts double-buffering
    kwargs = dict(dimension_semantics=semantics)
    if limit > 16 * _MIB:                        # only raise past the smallest default limit
        kwargs["vmem_limit_bytes"] = int(limit)
    return pltpu.CompilerParams(**kwargs)


def _row_bytes(cols_dtypes):
    """Per-batch-row VMEM bytes of one set of blocks, honoring 128-lane padding."""
    total = 0
    for cols, dtype in cols_dtypes:
        lanes = _round_up(max(int(cols), 1), 128)
        total += lanes * np.dtype(dtype).itemsize
    return total


def _pick_batch_tile(b, cols_dtypes, budget):
    """Largest batch tile whose double-buffered blocks fit `budget` bytes; forced to
    >=2 grid steps for large B so the axis pipelines / shards across v7x's 2 TCs."""
    per_row = 2 * _row_bytes(cols_dtypes)        # x2: BlockSpec double-buffering
    tb = max(8, budget // per_row)
    tb = min(tb, b, 4096)
    if b >= 64:
        tb = min(tb, _round_up(pl.cdiv(b, 2), 8))
    if tb >= b:
        return b                                 # full-dim block is always legal
    return max(8, (tb // 8) * 8)                 # multiple of 8 sublanes


def _mask_block_spec(mask, tb, n):
    """Tiled mask BlockSpec; folds the PyTorch mask.squeeze(1) into the spec."""
    if mask.ndim == 3:                           # (B, 1, N) -> kernel sees (TB, N)
        return pl.BlockSpec((tb, None, n), lambda i: (i, 0, 0))
    return pl.BlockSpec((tb, n), lambda i: (i, 0))


def _full_mask_block_spec(mask, b, n):
    if mask.ndim == 3:
        return pl.BlockSpec((b, None, n), lambda i: (0, 0, 0))
    return pl.BlockSpec((b, n), lambda i: (0, 0))


# ---------------------------------------------------------------------------
# Kernels
# ---------------------------------------------------------------------------

def _dueling_rows_kernel(v_ref, a_ref, m_ref, q_ref):
    """Q = V + A.masked_fill(mask==0, -inf) - rowwise masked mean of A."""
    a = a_ref[...].astype(jnp.float32)                         # (TB, N)
    v = v_ref[...].astype(jnp.float32)                         # (TB, 1)
    valid = m_ref[...] != 0                                    # (TB, N)
    cnt = jnp.sum(valid.astype(jnp.float32), axis=-1, keepdims=True)
    tot = jnp.sum(jnp.where(valid, a, 0.0), axis=-1, keepdims=True)
    mean_a = tot / cnt                                         # exact; all-masked row -> NaN
    # Rows of a padded partial last tile compute garbage; output writeback clips them.
    q_ref[...] = (v + jnp.where(valid, a, -jnp.inf) - mean_a).astype(q_ref.dtype)


def _dueling_rows_pa_kernel(v_ref, a_ref, m_ref, pa_ref, q_ref):
    """Q = V + past_action - rowwise masked mean of A.  Output block (TB, 1)."""
    a = a_ref[...].astype(jnp.float32)
    v = v_ref[...].astype(jnp.float32)
    pa = pa_ref[...].astype(jnp.float32)
    valid = m_ref[...] != 0
    cnt = jnp.sum(valid.astype(jnp.float32), axis=-1, keepdims=True)
    tot = jnp.sum(jnp.where(valid, a, 0.0), axis=-1, keepdims=True)
    q_ref[...] = (v + pa - tot / cnt).astype(q_ref.dtype)


def _global_fused_kernel(v_ref, a_ref, m_ref, q_ref):
    """Single-pass inference branch: global masked mean over all of A, then Q."""
    a = a_ref[...].astype(jnp.float32)                         # (B, N)
    v = v_ref[...].astype(jnp.float32)                         # (B, 1)
    valid = m_ref[...] != 0
    masked_a = jnp.where(valid, a, 0.0)
    ones = valid.astype(jnp.float32)
    # Two-stage reduce (lane then sublane) to a (1, 1) scalar, then exact divide.
    tot = jnp.sum(jnp.sum(masked_a, axis=1, keepdims=True), axis=0, keepdims=True)
    cnt = jnp.sum(jnp.sum(ones, axis=1, keepdims=True), axis=0, keepdims=True)
    mean_a = tot / cnt                                         # all-masked -> NaN (matches torch)
    q_ref[...] = (v + jnp.where(valid, a, -jnp.inf) - mean_a).astype(q_ref.dtype)


def _global_masked_sum_kernel(a_ref, m_ref, sum_ref, cnt_ref, *, tb, n_rows):
    """Accumulate the global masked sum / count of A across the batch grid."""
    i = pl.program_id(0)
    a = a_ref[...].astype(jnp.float32)                         # (TB, N)
    row = jax.lax.broadcasted_iota(jnp.int32, a.shape, 0) + i * tb
    valid = (m_ref[...] != 0) & (row < n_rows)                 # guard padded rows

    @pl.when(i == 0)
    def _():
        sum_ref[...] = jnp.zeros_like(sum_ref)
        cnt_ref[...] = jnp.zeros_like(cnt_ref)

    part = jnp.where(valid, a, 0.0)
    sum_ref[...] += jnp.sum(jnp.sum(part, axis=1, keepdims=True), axis=0, keepdims=True)
    ones = valid.astype(jnp.float32)
    cnt_ref[...] += jnp.sum(jnp.sum(ones, axis=1, keepdims=True), axis=0, keepdims=True)


def _global_q_kernel(sum_ref, cnt_ref, v_ref, a_ref, m_ref, q_ref):
    """Q = V + A.masked_fill(mask==0, -inf) - global mean; (sum, cnt) arrive via SMEM."""
    tot = jnp.full((1, 1), sum_ref[0, 0], jnp.float32)         # splat SMEM scalars to vectors
    cnt = jnp.full((1, 1), cnt_ref[0, 0], jnp.float32)
    mean_a = tot / cnt                                         # exact divide
    a = a_ref[...].astype(jnp.float32)
    v = v_ref[...].astype(jnp.float32)
    valid = m_ref[...] != 0
    q_ref[...] = (v + jnp.where(valid, a, -jnp.inf) - mean_a).astype(q_ref.dtype)


# ---------------------------------------------------------------------------
# pallas_call wrappers
# ---------------------------------------------------------------------------

def _call_rowwise(V, A, mask):
    b, n = A.shape
    out_dtype = jnp.result_type(V.dtype, A.dtype)
    budget = _vmem_budget_bytes()
    tb = _pick_batch_tile(
        b,
        [(1, V.dtype), (n, A.dtype), (n, mask.dtype), (n, out_dtype), (n, jnp.float32)],
        budget)
    nb = pl.cdiv(b, tb)
    return pl.pallas_call(
        _dueling_rows_kernel,
        out_shape=jax.ShapeDtypeStruct((b, n), out_dtype),
        grid=(nb,),
        in_specs=[
            pl.BlockSpec((tb, 1), lambda i: (i, 0)),
            pl.BlockSpec((tb, n), lambda i: (i, 0)),
            _mask_block_spec(mask, tb, n),
        ],
        out_specs=pl.BlockSpec((tb, n), lambda i: (i, 0)),
        compiler_params=_compiler_params(("parallel",), budget),
    )(V, A, mask)


def _call_rowwise_pa(V, A, mask, past_action):
    b, n = A.shape
    out_dtype = jnp.result_type(V.dtype, A.dtype, past_action.dtype)
    budget = _vmem_budget_bytes()
    tb = _pick_batch_tile(
        b,
        [(1, V.dtype), (n, A.dtype), (n, mask.dtype),
         (1, past_action.dtype), (1, out_dtype), (n, jnp.float32)],
        budget)
    nb = pl.cdiv(b, tb)
    return pl.pallas_call(
        _dueling_rows_pa_kernel,
        out_shape=jax.ShapeDtypeStruct((b, 1), out_dtype),
        grid=(nb,),
        in_specs=[
            pl.BlockSpec((tb, 1), lambda i: (i, 0)),
            pl.BlockSpec((tb, n), lambda i: (i, 0)),
            _mask_block_spec(mask, tb, n),
            pl.BlockSpec((tb, 1), lambda i: (i, 0)),
        ],
        out_specs=pl.BlockSpec((tb, 1), lambda i: (i, 0)),
        compiler_params=_compiler_params(("parallel",), budget),
    )(V, A, mask, past_action)


def _call_global(V, A, mask, force_tiled=False):
    """Global masked mean over all of A, then Q = V + A_masked - mean."""
    b, n = A.shape
    out_dtype = jnp.result_type(V.dtype, A.dtype)
    budget = _vmem_budget_bytes()
    cols = [(1, V.dtype), (n, A.dtype), (n, mask.dtype), (n, out_dtype), (n, jnp.float32)]

    # Common inference case (small B): everything fits comfortably in VMEM ->
    # ONE fused pass (single dispatch; A/mask read from HBM exactly once).
    if not force_tiled and b * _row_bytes(cols) <= budget // 2:
        return pl.pallas_call(
            _global_fused_kernel,
            out_shape=jax.ShapeDtypeStruct((b, n), out_dtype),
            grid=(1,),
            in_specs=[
                pl.BlockSpec((b, 1), lambda i: (0, 0)),
                pl.BlockSpec((b, n), lambda i: (0, 0)),
                _full_mask_block_spec(mask, b, n),
            ],
            out_specs=pl.BlockSpec((b, n), lambda i: (0, 0)),
            compiler_params=_compiler_params(("arbitrary",), budget),
        )(V, A, mask)

    # Large-batch fallback: tiled accumulate -> tiled apply; (sum, cnt) scalars are
    # handed to the second kernel through SMEM (no padded VMEM block, no host divide).
    tb = _pick_batch_tile(b, cols, budget)
    nb = pl.cdiv(b, tb)

    sum_a, cnt_a = pl.pallas_call(
        functools.partial(_global_masked_sum_kernel, tb=tb, n_rows=b),
        out_shape=(jax.ShapeDtypeStruct((1, 1), jnp.float32),
                   jax.ShapeDtypeStruct((1, 1), jnp.float32)),
        grid=(nb,),
        in_specs=[
            pl.BlockSpec((tb, n), lambda i: (i, 0)),
            _mask_block_spec(mask, tb, n),
        ],
        out_specs=(pl.BlockSpec((1, 1), lambda i: (0, 0)),
                   pl.BlockSpec((1, 1), lambda i: (0, 0))),
        compiler_params=_compiler_params(("arbitrary",), budget),
    )(A, mask)

    return pl.pallas_call(
        _global_q_kernel,
        out_shape=jax.ShapeDtypeStruct((b, n), out_dtype),
        grid=(nb,),
        in_specs=[
            pl.BlockSpec(memory_space=pltpu.MemorySpace.SMEM),    # sum
            pl.BlockSpec(memory_space=pltpu.MemorySpace.SMEM),    # cnt
            pl.BlockSpec((tb, 1), lambda i: (i, 0)),
            pl.BlockSpec((tb, n), lambda i: (i, 0)),
            _mask_block_spec(mask, tb, n),
        ],
        out_specs=pl.BlockSpec((tb, n), lambda i: (i, 0)),
        compiler_params=_compiler_params(("parallel",), budget),
    )(sum_a, cnt_a, V, A, mask)


# ---------------------------------------------------------------------------
# Public forward (mirrors DuelingDQN.forward)
# ---------------------------------------------------------------------------

def _normalize_inputs(V, A, mask):
    """A -> (B, N); V -> (B, 1); mask kept in native dtype as (B, N) or (B, 1, N)."""
    a2 = A if A.ndim == 2 else A.reshape(-1, A.shape[-1])
    b, n = a2.shape
    v2 = jnp.reshape(V, (-1, 1))
    if v2.shape[0] == 1 and b > 1:
        v2 = jnp.broadcast_to(v2, (b, 1))          # tiny
    m = mask
    if m.ndim == 1:
        m = m.reshape(1, n)
    if m.shape[0] == 1 and b > 1:
        # Rare edge case only; common shapes stay zero-copy.
        m = jnp.broadcast_to(m, (b,) + m.shape[1:])
    return v2, a2, m


def dueling_dqn_forward(V, A, mask, past_action=None, training=False):
    """JAX/Pallas equivalent of DuelingDQN.forward.

    Typical shapes: V (B, 1); A (B, N); mask (B, 1, N) or (B, N) in any dtype
    (float / int8 / bool); past_action (B, 1).  A row (or, in inference, batch)
    whose mask is entirely zero yields NaN (0/0), matching PyTorch.
    """
    v2, a2, m = _normalize_inputs(V, A, mask)

    if past_action is None and not training:
        # Branch 1: global masked mean over all of A -> same shape as A.
        return _call_global(v2, a2, m).reshape(A.shape)

    if training:
        b = a2.shape[0]
        if past_action is not None:
            # Branch 2: Q = V + past_action - rowwise mean -> (B, 1)
            pa = jnp.reshape(past_action, (b, 1))
            return _call_rowwise_pa(v2, a2, m, pa)
        # Branch 3: Q = V + A_masked - rowwise mean -> (B, N)
        return _call_rowwise(v2, a2, m).reshape(A.shape)

    # PyTorch leaves Q undefined (UnboundLocalError) for this combination.
    raise ValueError("past_action given with training=False: Q is undefined "
                     "in the reference module.")


# ---------------------------------------------------------------------------
# Smoke test
# ---------------------------------------------------------------------------

if __name__ == "__main__":
    key = jax.random.PRNGKey(0)
    k1, k2, k3, k4 = jax.random.split(key, 4)

    B, N = 64, 128     # batch (>=2 tiles -> pipelined / v7x-megacore-shardable), actions

    V = jax.random.normal(k1, (B, 1), dtype=jnp.float32)
    A = jax.random.normal(k2, (B, N), dtype=jnp.float32)
    mask = (jax.random.uniform(k3, (B, 1, N)) > 0.3).astype(jnp.int8)   # int8 mask: less HBM
    mask = mask.at[:, :, 0].set(1)                 # >=1 valid action per row (avoid 0/0)
    past_action = jax.random.normal(k4, (B, 1), dtype=jnp.float32)

    # Branch 3: training, no past_action -> (B, N)
    q_train = dueling_dqn_forward(V, A, mask, past_action=None, training=True)
    # Branch 2: training with past_action -> (B, 1)
    q_pa = dueling_dqn_forward(V, A, mask, past_action=past_action, training=True)
    # Branch 1: inference, single sample -> fused single-pass kernel
    q_inf1 = dueling_dqn_forward(V[:1], A[:1], mask[:1], past_action=None, training=False)
    # Branch 1: large-batch tiled fallback (exercised explicitly on the full batch)
    v2, a2, m2 = _normalize_inputs(V, A, mask)
    q_infN = _call_global(v2, a2, m2, force_tiled=True)
    jax.block_until_ready((q_train, q_pa, q_inf1, q_infN))

    # ---- pure-JAX references ----
    valid = jnp.squeeze(mask, axis=1) != 0
    nA = jnp.sum(valid, axis=1, keepdims=True).astype(jnp.float32)
    mean_a = jnp.sum(jnp.where(valid, A, 0.0), axis=1, keepdims=True) / nA
    ref_train = V + jnp.where(valid, A, -jnp.inf) - mean_a
    ref_pa = V + past_action - mean_a

    v1 = valid[:1]
    g1 = jnp.sum(jnp.where(v1, A[:1], 0.0)) / jnp.sum(v1)
    ref_inf1 = V[:1] + jnp.where(v1, A[:1], -jnp.inf) - g1

    gN = jnp.sum(jnp.where(valid, A, 0.0)) / jnp.sum(valid)
    ref_infN = V + jnp.where(valid, A, -jnp.inf) - gN

    def _check(got, ref, tol=1e-4):
        fin = jnp.isfinite(ref)
        assert got.shape == ref.shape, (got.shape, ref.shape)
        assert bool(jnp.all(jnp.isfinite(got) == fin))
        assert bool(jnp.allclose(jnp.where(fin, got, 0.0),
                                 jnp.where(fin, ref, 0.0), atol=tol, rtol=tol))

    _check(q_train, ref_train)
    _check(q_pa, ref_pa)
    _check(q_inf1, ref_inf1)
    _check(q_infN, ref_infN)

    print("KERNEL_OK")
</pallas_src>

<mosaic_0001>
module attributes {stable_mosaic.version = 11 : i64} {
  func.func @_dueling_rows_kernel(%arg0: i32, %arg1: memref<32x1xf32, #tpu.memory_space<vmem>>, %arg2: memref<32x128xf32, #tpu.memory_space<vmem>>, %arg3: memref<32x1x128xi8, #tpu.memory_space<vmem>>, %arg4: memref<32x128xf32, #tpu.memory_space<vmem>>) attributes {dimension_semantics = [#tpu.dimension_semantics<parallel>], iteration_bounds = array<i64: 2>, scalar_prefetch = 0 : i64, scratch_operands = 0 : i64, tpu.core_type = #tpu.core_type<tc>, window_params = [{transform_indices = @transform_0, window_bounds = array<i64: 32, 1>}, {transform_indices = @transform_1, window_bounds = array<i64: 32, 128>}, {transform_indices = @transform_2, window_bounds = array<i64: 32, 1, 128>}, {transform_indices = @transform_3, window_bounds = array<i64: 32, 128>}]} {
    %c0 = arith.constant 0 : index
    %c0_0 = arith.constant 0 : index
    %0 = vector.load %arg2[%c0, %c0_0] : memref<32x128xf32, #tpu.memory_space<vmem>>, vector<32x128xf32>
    %c0_1 = arith.constant 0 : index
    %c0_2 = arith.constant 0 : index
    %1 = vector.load %arg1[%c0_1, %c0_2] : memref<32x1xf32, #tpu.memory_space<vmem>>, vector<32x1xf32>
    %c0_3 = arith.constant 0 : index
    %c0_4 = arith.constant 0 : index
    %c0_5 = arith.constant 0 : index
    %2 = vector.load %arg3[%c0_3, %c0_4, %c0_5] : memref<32x1x128xi8, #tpu.memory_space<vmem>>, vector<32x1x128xi8>
    %3 = vector.shape_cast %2 : vector<32x1x128xi8> to vector<32x128xi8>
    %c0_i8 = arith.constant 0 : i8
    %4 = vector.broadcast %c0_i8 : i8 to vector<32x128xi8>
    %5 = arith.cmpi ne, %3, %4 : vector<32x128xi8>
    %6 = arith.extui %5 : vector<32x128xi1> to vector<32x128xi32>
    %7 = arith.sitofp %6 : vector<32x128xi32> to vector<32x128xf32>
    %cst = arith.constant dense<0.000000e+00> : vector<32xf32>
    %8 = vector.multi_reduction <add>, %7, %cst [1] : vector<32x128xf32> to vector<32xf32>
    %9 = vector.shape_cast %8 : vector<32xf32> to vector<32x1xf32>
    %cst_6 = arith.constant 0.000000e+00 : f32
    %10 = vector.broadcast %cst_6 : f32 to vector<32x128xf32>
    %11 = arith.select %5, %0, %10 : vector<32x128xi1>, vector<32x128xf32>
    %cst_7 = arith.constant dense<0.000000e+00> : vector<32xf32>
    %12 = vector.multi_reduction <add>, %11, %cst_7 [1] : vector<32x128xf32> to vector<32xf32>
    %13 = vector.shape_cast %12 : vector<32xf32> to vector<32x1xf32>
    %14 = arith.divf %13, %9 : vector<32x1xf32>
    %cst_8 = arith.constant 0xFF800000 : f32
    %15 = vector.broadcast %cst_8 : f32 to vector<32x128xf32>
    %16 = arith.select %5, %0, %15 : vector<32x128xi1>, vector<32x128xf32>
    %17 = vector.broadcast %1 : vector<32x1xf32> to vector<32x128xf32>
    %18 = arith.addf %17, %16 : vector<32x128xf32>
    %19 = vector.broadcast %14 : vector<32x1xf32> to vector<32x128xf32>
    %20 = arith.subf %18, %19 : vector<32x128xf32>
    %c0_9 = arith.constant 0 : index
    %c0_10 = arith.constant 0 : index
    %21 = vector.load %arg4[%c0_9, %c0_10] : memref<32x128xf32, #tpu.memory_space<vmem>>, vector<32x128xf32>
    tpu.vector_store %arg4[%c0_9, %c0_10], %20 {strides = array<i32>} : memref<32x128xf32, #tpu.memory_space<vmem>>, vector<32x128xf32>,
    return
  }
  func.func @transform_0(%arg0: i32) -> (i32, i32) {
    %c0_i32 = arith.constant 0 : i32
    %c0_i32_0 = arith.constant 0 : i32
    return %arg0, %c0_i32 : i32, i32
  }
  func.func @transform_1(%arg0: i32) -> (i32, i32) {
    %c0_i32 = arith.constant 0 : i32
    %c0_i32_0 = arith.constant 0 : i32
    return %arg0, %c0_i32 : i32, i32
  }
  func.func @transform_2(%arg0: i32) -> (i32, i32, i32) {
    %c0_i32 = arith.constant 0 : i32
    %c0_i32_0 = arith.constant 0 : i32
    %c0_i32_1 = arith.constant 0 : i32
    return %arg0, %c0_i32, %c0_i32_0 : i32, i32, i32
  }
  func.func @transform_3(%arg0: i32) -> (i32, i32) {
    %c0_i32 = arith.constant 0 : i32
    %c0_i32_0 = arith.constant 0 : i32
    return %arg0, %c0_i32 : i32, i32
  }
}

</mosaic_0001>

<llo_original>
// kernel: tpu_custom_call.1
$region0: #{tpu_custom_call.1}
  #allocation0 [shape = 'u32[]', space=smem, size = 0x4, offset = 0x4, fixed_abs, tag = 'smem constant byte address 0x4 - core index']
  #allocation1 [shape = 'u32[72,128]{1,0:T(1,128)}', space=vmem, size = 0x9000, scoped, tag = 'internal scratch']
  %s0 = inlined_call_operand.vmem [shape: f32[64,1], index: 0, kind: input, shape index: {}]
  %s1 = inlined_call_operand.vmem [shape: f32[64,128], index: 1, kind: input, shape index: {}]
  %s2 = inlined_call_operand.vmem [shape: s8[64,1,128], index: 2, kind: input, shape index: {}]
  %s3 = inlined_call_operand.hbm [shape: f32[64,128], index: 3, kind: output, shape index: {}]
  %s4 = sld [smem:[#allocation0]]
  $region45: #{tpu_custom_call.1} parent=0
    _
  %s6 = ssub.s32 1, %s4
  %s7 = scalar_select 0, %s6, %s4
  $region1: #{tpu_custom_call.1} parent=0
    #allocation2 [shape = 'u8[32768]{0}', space=vmem, size = 0x8000, scoped, tag = 'output window, operand 0']
    #allocation3 [shape = 's32[2]{0}', space=sflag, size = 0x8, scoped, tag = 'scoped memory for tpu_custom_call.1']
    %8 = vsyncpa [#allocation3], 0
    %s9 = scalar_lea.sflag [#allocation3], 1
    %10 = vsyncpa %s9, 0
    loop: start=0, step=1, limit=4
    $region2: #{tpu_custom_call.1} parent=1 // loop_pre_header
      _
    $region3: #{tpu_custom_call.1} parent=1 // loop_header
      %s12 = sphi 0, %s16
      %p13 = scmp.ge.s32.totalorder %s12, 4
      %s22 = sphi 0, %s24
      %s25 = sphi 0, %s22
      %s26 = sphi 0, %s25
      %s42 = sphi 0, %s26
      %s48 = sphi 0, %s50
      %s51 = sphi 0, %s48
      %s52 = sphi 0, %s51
      %s68 = sphi 0, %s52
      %s74 = sphi 0, %s76
      %s77 = sphi 0, %s74
      %s78 = sphi 0, %s77
      %s94 = sphi 0, %s78
      %s100 = sphi 0, %s102
      %s103 = sphi 0, %s100
      %s104 = sphi 0, %s103
      %s120 = sphi 0, %s104
    $region4: #{tpu_custom_call.1} parent=1 // loop_header_branch
      %15 = sbr.rel (%p13) target = $region8
    $region5: #{tpu_custom_call.1} parent=1 // loop_body
      %s17 = ssub.s32 %s12, 1
      %s18 = ssub.s32 %s12, 2
      %s19 = sadd.s32 %s12, 1
      %s20 = ssub.s32 %s12, %s19
      %p21 = scmp.eq.s32.totalorder %s20, 0
      %s23 = sadd.s32 %s22, 1
      %s24 = scalar_select %p21, %s22, %s23
      %p27 = pneg %p21
      %p28 = scmp.eq.s32.totalorder %s12, 1
      %p29 = por %p27, %p28
      %p30 = scmp.ne.s32.totalorder %s22, %s25
      %p31 = scmp.eq.s32.totalorder %s12, 0
      %p32 = por %p30, %p31
      %p33 = scmp.ne.s32.totalorder %s22, %s25
      %p34 = scmp.eq.s32.totalorder %s17, 1
      %p35 = por %p33, %p34
      %p36 = scmp.ne.s32.totalorder %s25, %s26
      %p37 = scmp.eq.s32.totalorder %s17, 0
      %p38 = por %p36, %p37
      %p39 = scmp.ne.s32.totalorder %s25, %s26
      %p40 = scmp.eq.s32.totalorder %s18, 1
      %p41 = por %p39, %p40
      %p43 = scmp.ne.s32.totalorder %s26, %s42
      %p44 = scmp.eq.s32.totalorder %s18, 0
      %p45 = por %p43, %p44
      %s46 = ssub.s32 %s12, %s19
      %p47 = scmp.eq.s32.totalorder %s46, 0
      %s49 = sadd.s32 %s48, 1
      %s50 = scalar_select %p47, %s48, %s49
      %p53 = pneg %p47
      %p54 = scmp.eq.s32.totalorder %s12, 1
      %p55 = por %p53, %p54
      %p56 = scmp.ne.s32.totalorder %s48, %s51
      %p57 = scmp.eq.s32.totalorder %s12, 0
      %p58 = por %p56, %p57
      %p59 = scmp.ne.s32.totalorder %s48, %s51
      %p60 = scmp.eq.s32.totalorder %s17, 1
      %p61 = por %p59, %p60
      %p62 = scmp.ne.s32.totalorder %s51, %s52
      %p63 = scmp.eq.s32.totalorder %s17, 0
      %p64 = por %p62, %p63
      %p65 = scmp.ne.s32.totalorder %s51, %s52
      %p66 = scmp.eq.s32.totalorder %s18, 1
      %p67 = por %p65, %p66
      %p69 = scmp.ne.s32.totalorder %s52, %s68
      %p70 = scmp.eq.s32.totalorder %s18, 0
      %p71 = por %p69, %p70
      %s72 = ssub.s32 %s12, %s19
      %p73 = scmp.eq.s32.totalorder %s72, 0
      %s75 = sadd.s32 %s74, 1
      %s76 = scalar_select %p73, %s74, %s75
      %p79 = pneg %p73
      %p80 = scmp.eq.s32.totalorder %s12, 1
      %p81 = por %p79, %p80
      %p82 = scmp.ne.s32.totalorder %s74, %s77
      %p83 = scmp.eq.s32.totalorder %s12, 0
      %p84 = por %p82, %p83
      %p85 = scmp.ne.s32.totalorder %s74, %s77
      %p86 = scmp.eq.s32.totalorder %s17, 1
      %p87 = por %p85, %p86
      %p88 = scmp.ne.s32.totalorder %s77, %s78
      %p89 = scmp.eq.s32.totalorder %s17, 0
      %p90 = por %p88, %p89
      %p91 = scmp.ne.s32.totalorder %s77, %s78
      %p92 = scmp.eq.s32.totalorder %s18, 1
      %p93 = por %p91, %p92
      %p95 = scmp.ne.s32.totalorder %s78, %s94
      %p96 = scmp.eq.s32.totalorder %s18, 0
      %p97 = por %p95, %p96
      %s98 = ssub.s32 %s12, %s19
      %p99 = scmp.eq.s32.totalorder %s98, 0
      %s101 = sadd.s32 %s100, 1
      %s102 = scalar_select %p99, %s100, %s101
      %p105 = pneg %p99
      %p106 = scmp.eq.s32.totalorder %s12, 1
      %p107 = por %p105, %p106
      %p108 = scmp.ne.s32.totalorder %s100, %s103
      %p109 = scmp.eq.s32.totalorder %s12, 0
      %p110 = por %p108, %p109
      %p111 = scmp.ne.s32.totalorder %s100, %s103
      %p112 = scmp.eq.s32.totalorder %s17, 1
      %p113 = por %p111, %p112
      %p114 = scmp.ne.s32.totalorder %s103, %s104
      %p115 = scmp.eq.s32.totalorder %s17, 0
      %p116 = por %p114, %p115
      %p117 = scmp.ne.s32.totalorder %s103, %s104
      %p118 = scmp.eq.s32.totalorder %s18, 1
      %p119 = por %p117, %p118
      %p121 = scmp.ne.s32.totalorder %s104, %s120
      %p122 = scmp.eq.s32.totalorder %s18, 0
      %p123 = por %p121, %p122
      %p124 = scmp.le.s32.totalorder 1, %s12
      %p125 = scmp.lt.s32.totalorder %s12, 3
      %p126 = pnand %p124, %p125
      %p127 = pneg %p126
      // Predicated region
      $region9: #{tpu_custom_call.1} parent=5 // pred_check
        _
      $region10: #{tpu_custom_call.1} parent=5 // pred_check_branch
        %129 = sbr.rel (%p126) target = $region12
      $region11: #{tpu_custom_call.1} parent=5 // pred_region
        %s130 = ssub.s32 %s12, 1
      $region12: #{tpu_custom_call.1} parent=5 // pred_fallthru
        _
      %p131 = scmp.lt.s32.totalorder %s12, 2
      // Predicated region
      $region13: #{tpu_custom_call.1} parent=5 // pred_check
        %p132 = pneg %p131
      $region14: #{tpu_custom_call.1} parent=5 // pred_check_branch
        %134 = sbr.rel (%p132) target = $region16
      $region15: #{tpu_custom_call.1} parent=5 // pred_region
        // Predicated region
        $region17: #{tpu_custom_call.1} parent=15 // pred_check
          %p135 = pneg %p32
        $region18: #{tpu_custom_call.1} parent=15 // pred_check_branch
          %137 = sbr.rel (%p135) target = $region20
        $region19: #{tpu_custom_call.1} parent=15 // pred_region
          %s138 = smul.u32 4, %s12
          %p139 = scmp.lt.s32.totalorder %s138, 7
          %s140 = scalar_select %p139, %s138, 7
          %s141 = smul.addr %s140, 8
          %s142 = scalar_lea.vmem %s0, %s141
          %s143 = smul.u32 4, %s12
        $region20: #{tpu_custom_call.1} parent=15 // pred_fallthru
          _
        // Predicated region
        $region21: #{tpu_custom_call.1} parent=15 // pred_check
          %p144 = pneg %p58
        $region22: #{tpu_custom_call.1} parent=15 // pred_check_branch
          %146 = sbr.rel (%p144) target = $region24
        $region23: #{tpu_custom_call.1} parent=15 // pred_region
          %s147 = smul.u32 4, %s12
          %p148 = scmp.lt.s32.totalorder %s147, 7
          %s149 = scalar_select %p148, %s147, 7
          %s150 = smul.addr %s149, 8
          %s151 = scalar_lea.vmem %s1, %s150
          %s152 = smul.u32 4, %s12
        $region24: #{tpu_custom_call.1} parent=15 // pred_fallthru
          _
        // Predicated region
        $region25: #{tpu_custom_call.1} parent=15 // pred_check
          %p153 = pneg %p84
        $region26: #{tpu_custom_call.1} parent=15 // pred_check_branch
          %155 = sbr.rel (%p153) target = $region28
        $region27: #{tpu_custom_call.1} parent=15 // pred_region
          %s156 = smul.u32 32, %s12
          %p157 = scmp.lt.s32.totalorder %s156, 63
          %s158 = scalar_select %p157, %s156, 63
          %s159 = scalar_lea.vmem %s2, %s158
          %s160 = smul.u32 32, %s12
        $region28: #{tpu_custom_call.1} parent=15 // pred_fallthru
          _
      $region16: #{tpu_custom_call.1} parent=5 // pred_fallthru
        _
      %p161 = scmp.le.s32.totalorder 1, %s12
      %p162 = scmp.lt.s32.totalorder %s12, 3
      %p163 = pnand %p161, %p162
      %p164 = pneg %p163
      // Predicated region
      $region29: #{tpu_custom_call.1} parent=5 // pred_check
        _
      $region30: #{tpu_custom_call.1} parent=5 // pred_check_branch
        %166 = sbr.rel (%p163) target = $region32
      $region31: #{tpu_custom_call.1} parent=5 // pred_region
        %s167 = ssub.s32 %s12, 1
        %s168 = smul.u32 4, %s17
        %p169 = scmp.lt.s32.totalorder %s168, 7
        %s170 = scalar_select %p169, %s168, 7
        %s171 = smul.addr %s170, 8
        %s172 = scalar_lea.vmem %s0, %s171
        %p173 = pneg %p38
        %p174 = pneg %p35
        %s175 = smul.u32 4, %s17
        %p176 = scmp.lt.s32.totalorder %s175, 7
        %s177 = scalar_select %p176, %s175, 7
        %s178 = smul.addr %s177, 8
        %s179 = scalar_lea.vmem %s1, %s178
        %p180 = pneg %p64
        %p181 = pneg %p61
        %s182 = smul.u32 32, %s17
        %p183 = scmp.lt.s32.totalorder %s182, 63
        %s184 = scalar_select %p183, %s182, 63
        %s185 = scalar_lea.vmem %s2, %s184
        %p186 = pneg %p90
        %p187 = pneg %p87
        %p188 = pneg %p116
        %p189 = pneg %p113
        %s190 = sand.u32 %s103, 1
        %s191 = scalar_lea.sflag [#allocation3], %s190
        %s192 = sand.u32 %s103, 1
        %s193 = smul.addr %s192, 32
        %s194 = scalar_lea.vmem [#allocation2], %s193
        %s195 = smul.u32 4, %s17
        %p196 = scmp.lt.s32.totalorder %s195, 7
        %s197 = scalar_select %p196, %s195, 7
        %s198 = smul.addr %s197, 8
        %s199 = scalar_lea.vmem %s0, %s198
        %s200 = smul.u32 4, %s17
        %s201 = smul.u32 4, %s17
        %p202 = scmp.lt.s32.totalorder %s201, 7
        %s203 = scalar_select %p202, %s201, 7
        %s204 = smul.addr %s203, 8
        %s205 = scalar_lea.vmem %s1, %s204
        %s206 = smul.u32 4, %s17
        %s207 = smul.u32 32, %s17
        %p208 = scmp.lt.s32.totalorder %s207, 63
        %s209 = scalar_select %p208, %s207, 63
        %s210 = scalar_lea.vmem %s2, %s209
        %s211 = smul.u32 32, %s17
        %s212 = smul.u32 4, %s17
        %v215 = vld [vmem:[%s205] sm:$0xff]
        %v216 = vld [vmem:[%s205 + $0x8] sm:$0xff]
        %v217 = vld [vmem:[%s205 + $0x10] sm:$0xff]
        %v218 = vld [vmem:[%s205 + $0x18] sm:$0xff]
        %v219 = vld [vmem:[%s199] sm:$0xff]
        %v220 = vld [vmem:[%s199 + $0x8] sm:$0xff]
        %v221 = vld [vmem:[%s199 + $0x10] sm:$0xff]
        %v222 = vld [vmem:[%s199 + $0x18] sm:$0xff]
        %v223 = vld [vmem:[%s210] sm:$0x1]
        %v224 = vld [vmem:[%s210 + $0x1] sm:$0x1]
        %v225 = vld [vmem:[%s210 + $0x2] sm:$0x1]
        %v226 = vld [vmem:[%s210 + $0x3] sm:$0x1]
        %v227 = vld [vmem:[%s210 + $0x4] sm:$0x1]
        %v228 = vld [vmem:[%s210 + $0x5] sm:$0x1]
        %v229 = vld [vmem:[%s210 + $0x6] sm:$0x1]
        %v230 = vld [vmem:[%s210 + $0x7] sm:$0x1]
        %v231 = vld [vmem:[%s210 + $0x8] sm:$0x1]
        %v232 = vld [vmem:[%s210 + $0x9] sm:$0x1]
        %v233 = vld [vmem:[%s210 + $0xa] sm:$0x1]
        %v234 = vld [vmem:[%s210 + $0xb] sm:$0x1]
        %v235 = vld [vmem:[%s210 + $0xc] sm:$0x1]
        %v236 = vld [vmem:[%s210 + $0xd] sm:$0x1]
        %v237 = vld [vmem:[%s210 + $0xe] sm:$0x1]
        %v238 = vld [vmem:[%s210 + $0xf] sm:$0x1]
        %v239 = vld [vmem:[%s210 + $0x10] sm:$0x1]
        %v240 = vld [vmem:[%s210 + $0x11] sm:$0x1]
        %v241 = vld [vmem:[%s210 + $0x12] sm:$0x1]
        %v242 = vld [vmem:[%s210 + $0x13] sm:$0x1]
        %v243 = vld [vmem:[%s210 + $0x14] sm:$0x1]
        %v244 = vld [vmem:[%s210 + $0x15] sm:$0x1]
        %v245 = vld [vmem:[%s210 + $0x16] sm:$0x1]
        %v246 = vld [vmem:[%s210 + $0x17] sm:$0x1]
        %v247 = vld [vmem:[%s210 + $0x18] sm:$0x1]
        %v248 = vld [vmem:[%s210 + $0x19] sm:$0x1]
        %v249 = vld [vmem:[%s210 + $0x1a] sm:$0x1]
        %v250 = vld [vmem:[%s210 + $0x1b] sm:$0x1]
        %v251 = vld [vmem:[%s210 + $0x1c] sm:$0x1]
        %v252 = vld [vmem:[%s210 + $0x1d] sm:$0x1]
        %v253 = vld [vmem:[%s210 + $0x1e] sm:$0x1]
        %v254 = vld [vmem:[%s210 + $0x1f] sm:$0x1]
        %vm255 = vnez %v223
        %vm256 = vnez %v224
        %vm257 = vnez %v225
        %vm258 = vnez %v226
        %vm259 = vnez %v227
        %vm260 = vnez %v228
        %vm261 = vnez %v229
        %vm262 = vnez %v230
        %vm263 = vnez %v231
        %vm264 = vnez %v232
        %vm265 = vnez %v233
        %vm266 = vnez %v234
        %vm267 = vnez %v235
        %vm268 = vnez %v236
        %vm269 = vnez %v237
        %vm270 = vnez %v238
        %vm271 = vnez %v239
        %vm272 = vnez %v240
        %vm273 = vnez %v241
        %vm274 = vnez %v242
        %vm275 = vnez %v243
        %vm276 = vnez %v244
        %vm277 = vnez %v245
        %vm278 = vnez %v246
        %vm279 = vnez %v247
        %vm280 = vnez %v248
        %vm281 = vnez %v249
        %vm282 = vnez %v250
        %vm283 = vnez %v251
        %vm284 = vnez %v252
        %vm285 = vnez %v253
        %vm286 = vnez %v254
        %v287 = vsel %vm255, 16843009, 0
        %v288 = vsel %vm256, 16843009, 0
        %v289 = vsel %vm257, 16843009, 0
        %v290 = vsel %vm258, 16843009, 0
        %v291 = vsel %vm259, 16843009, 0
        %v292 = vsel %vm260, 16843009, 0
        %v293 = vsel %vm261, 16843009, 0
        %v294 = vsel %vm262, 16843009, 0
        %v295 = vsel %vm263, 16843009, 0
        %v296 = vsel %vm264, 16843009, 0
        %v297 = vsel %vm265, 16843009, 0
        %v298 = vsel %vm266, 16843009, 0
        %v299 = vsel %vm267, 16843009, 0
        %v300 = vsel %vm268, 16843009, 0
        %v301 = vsel %vm269, 16843009, 0
        %v302 = vsel %vm270, 16843009, 0
        %v303 = vsel %vm271, 16843009, 0
        %v304 = vsel %vm272, 16843009, 0
        %v305 = vsel %vm273, 16843009, 0
        %v306 = vsel %vm274, 16843009, 0
        %v307 = vsel %vm275, 16843009, 0
        %v308 = vsel %vm276, 16843009, 0
        %v309 = vsel %vm277, 16843009, 0
        %v310 = vsel %vm278, 16843009, 0
        %v311 = vsel %vm279, 16843009, 0
        %v312 = vsel %vm280, 16843009, 0
        %v313 = vsel %vm281, 16843009, 0
        %v314 = vsel %vm282, 16843009, 0
        %v315 = vsel %vm283, 16843009, 0
        %v316 = vsel %vm284, 16843009, 0
        %v317 = vsel %vm285, 16843009, 0
        %v318 = vsel %vm286, 16843009, 0
        %320 = vst [vmem:[#allocation1] ss:$2 sm:$0xff] %v287
        %v321 = vld [vmem:[#allocation1] sm:$0xff]
        %s324 = scalar_lea.vmem [#allocation1], 16
        %325 = vst [vmem:[%s324] ss:$2 sm:$0xff] %v288
        %v326 = vld [vmem:[#allocation1 + $0x10] sm:$0xff]
        %s329 = scalar_lea.vmem [#allocation1], 32
        %330 = vst [vmem:[%s329] ss:$2 sm:$0xff] %v289
        %v331 = vld [vmem:[#allocation1 + $0x20] sm:$0xff]
        %s334 = scalar_lea.vmem [#allocation1], 48
        %335 = vst [vmem:[%s334] ss:$2 sm:$0xff] %v290
        %v336 = vld [vmem:[#allocation1 + $0x30] sm:$0xff]
        %339 = vst [vmem:[#allocation1] ss:$2 sm:$0xff] %v291
        %v340 = vld [vmem:[#allocation1] sm:$0xff]
        %343 = vst [vmem:[%s324] ss:$2 sm:$0xff] %v292
        %v344 = vld [vmem:[#allocation1 + $0x10] sm:$0xff]
        %347 = vst [vmem:[%s329] ss:$2 sm:$0xff] %v293
        %v348 = vld [vmem:[#allocation1 + $0x20] sm:$0xff]
        %351 = vst [vmem:[%s334] ss:$2 sm:$0xff] %v294
        %v352 = vld [vmem:[#allocation1 + $0x30] sm:$0xff]
        %355 = vst [vmem:[#allocation1] ss:$2 sm:$0xff] %v295
        %v356 = vld [vmem:[#allocation1] sm:$0xff]
        %359 = vst [vmem:[%s324] ss:$2 sm:$0xff] %v296
        %v360 = vld [vmem:[#allocation1 + $0x10] sm:$0xff]
        %363 = vst [vmem:[%s329] ss:$2 sm:$0xff] %v297
        %v364 = vld [vmem:[#allocation1 + $0x20] sm:$0xff]
        %367 = vst [vmem:[%s334] ss:$2 sm:$0xff] %v298
        %v368 = vld [vmem:[#allocation1 + $0x30] sm:$0xff]
        %371 = vst [vmem:[#allocation1] ss:$2 sm:$0xff] %v299
        %v372 = vld [vmem:[#allocation1] sm:$0xff]
        %375 = vst [vmem:[%s324] ss:$2 sm:$0xff] %v300
        %v376 = vld [vmem:[#allocation1 + $0x10] sm:$0xff]
        %379 = vst [vmem:[%s329] ss:$2 sm:$0xff] %v301
        %v380 = vld [vmem:[#allocation1 + $0x20] sm:$0xff]
        %383 = vst [vmem:[%s334] ss:$2 sm:$0xff] %v302
        %v384 = vld [vmem:[#allocation1 + $0x30] sm:$0xff]
        %387 = vst [vmem:[#allocation1] ss:$2 sm:$0xff] %v303
        %v388 = vld [vmem:[#allocation1] sm:$0xff]
        %391 = vst [vmem:[%s324] ss:$2 sm:$0xff] %v304
        %v392 = vld [vmem:[#allocation1 + $0x10] sm:$0xff]
        %395 = vst [vmem:[%s329] ss:$2 sm:$0xff] %v305
        %v396 = vld [vmem:[#allocation1 + $0x20] sm:$0xff]
        %399 = vst [vmem:[%s334] ss:$2 sm:$0xff] %v306
        %v400 = vld [vmem:[#allocation1 + $0x30] sm:$0xff]
        %403 = vst [vmem:[#allocation1] ss:$2 sm:$0xff] %v307
        %v404 = vld [vmem:[#allocation1] sm:$0xff]
        %407 = vst [vmem:[%s324] ss:$2 sm:$0xff] %v308
        %v408 = vld [vmem:[#allocation1 + $0x10] sm:$0xff]
        %411 = vst [vmem:[%s329] ss:$2 sm:$0xff] %v309
        %v412 = vld [vmem:[#allocation1 + $0x20] sm:$0xff]
        %415 = vst [vmem:[%s334] ss:$2 sm:$0xff] %v310
        %v416 = vld [vmem:[#allocation1 + $0x30] sm:$0xff]
        %419 = vst [vmem:[#allocation1] ss:$2 sm:$0xff] %v311
        %v420 = vld [vmem:[#allocation1] sm:$0xff]
        %423 = vst [vmem:[%s324] ss:$2 sm:$0xff] %v312
        %v424 = vld [vmem:[#allocation1 + $0x10] sm:$0xff]
        %427 = vst [vmem:[%s329] ss:$2 sm:$0xff] %v313
        %v428 = vld [vmem:[#allocation1 + $0x20] sm:$0xff]
        %431 = vst [vmem:[%s334] ss:$2 sm:$0xff] %v314
        %v432 = vld [vmem:[#allocation1 + $0x30] sm:$0xff]
        %435 = vst [vmem:[#allocation1] ss:$2 sm:$0xff] %v315
        %v436 = vld [vmem:[#allocation1] sm:$0xff]
        %439 = vst [vmem:[%s324] ss:$2 sm:$0xff] %v316
        %v440 = vld [vmem:[#allocation1 + $0x10] sm:$0xff]
        %443 = vst [vmem:[%s329] ss:$2 sm:$0xff] %v317
        %v444 = vld [vmem:[#allocation1 + $0x20] sm:$0xff]
        %447 = vst [vmem:[%s334] ss:$2 sm:$0xff] %v318
        %v448 = vld [vmem:[#allocation1 + $0x30] sm:$0xff]
        %v450 = vunpack.c.0.s8 %v321
        %v451 = vunpack.c.0.s8 %v326
        %v452 = vunpack.c.0.s8 %v331
        %v453 = vunpack.c.0.s8 %v336
        %v454 = vunpack.c.0.s8 %v340
        %v455 = vunpack.c.0.s8 %v344
        %v456 = vunpack.c.0.s8 %v348
        %v457 = vunpack.c.0.s8 %v352
        %v458 = vunpack.c.0.s8 %v356
        %v459 = vunpack.c.0.s8 %v360
        %v460 = vunpack.c.0.s8 %v364
        %v461 = vunpack.c.0.s8 %v368
        %v462 = vunpack.c.0.s8 %v372
        %v463 = vunpack.c.0.s8 %v376
        %v464 = vunpack.c.0.s8 %v380
        %v465 = vunpack.c.0.s8 %v384
        %v466 = vunpack.c.0.s8 %v388
        %v467 = vunpack.c.0.s8 %v392
        %v468 = vunpack.c.0.s8 %v396
        %v469 = vunpack.c.0.s8 %v400
        %v470 = vunpack.c.0.s8 %v404
        %v471 = vunpack.c.0.s8 %v408
        %v472 = vunpack.c.0.s8 %v412
        %v473 = vunpack.c.0.s8 %v416
        %v474 = vunpack.c.0.s8 %v420
        %v475 = vunpack.c.0.s8 %v424
        %v476 = vunpack.c.0.s8 %v428
        %v477 = vunpack.c.0.s8 %v432
        %v478 = vunpack.c.0.s8 %v436
        %v479 = vunpack.c.0.s8 %v440
        %v480 = vunpack.c.0.s8 %v444
        %v481 = vunpack.c.0.s8 %v448
        %v482 = vrot.slane %v451, 7
        %vm483 = vcmask 1041409
        %v484 = vsel %vm483, %v482, %v450
        %v485 = vrot.slane %v452, 6
        %vm486 = vcmask 1042434
        %v487 = vsel %vm486, %v485, %v484
        %v488 = vrot.slane %v453, 5
        %vm489 = vcmask 1043459
        %v490 = vsel %vm489, %v488, %v487
        %v491 = vrot.slane %v454, 4
        %vm492 = vcmask 1044484
        %v493 = vsel %vm492, %v491, %v490
        %v494 = vrot.slane %v455, 3
        %vm495 = vcmask 1045509
        %v496 = vsel %vm495, %v494, %v493
        %v497 = vrot.slane %v456, 2
        %vm498 = vcmask 1046534
        %v499 = vsel %vm498, %v497, %v496
        %v500 = vrot.slane %v457, 1
        %vm501 = vcmask 1047559
        %v502 = vsel %vm501, %v500, %v499
        %v503 = vrot.slane %v459, 7
        %v504 = vsel %vm483, %v503, %v458
        %v505 = vrot.slane %v460, 6
        %v506 = vsel %vm486, %v505, %v504
        %v507 = vrot.slane %v461, 5
        %v508 = vsel %vm489, %v507, %v506
        %v509 = vrot.slane %v462, 4
        %v510 = vsel %vm492, %v509, %v508
        %v511 = vrot.slane %v463, 3
        %v512 = vsel %vm495, %v511, %v510
        %v513 = vrot.slane %v464, 2
        %v514 = vsel %vm498, %v513, %v512
        %v515 = vrot.slane %v465, 1
        %v516 = vsel %vm501, %v515, %v514
        %v517 = vrot.slane %v467, 7
        %v518 = vsel %vm483, %v517, %v466
        %v519 = vrot.slane %v468, 6
        %v520 = vsel %vm486, %v519, %v518
        %v521 = vrot.slane %v469, 5
        %v522 = vsel %vm489, %v521, %v520
        %v523 = vrot.slane %v470, 4
        %v524 = vsel %vm492, %v523, %v522
        %v525 = vrot.slane %v471, 3
        %v526 = vsel %vm495, %v525, %v524
        %v527 = vrot.slane %v472, 2
        %v528 = vsel %vm498, %v527, %v526
        %v529 = vrot.slane %v473, 1
        %v530 = vsel %vm501, %v529, %v528
        %v531 = vrot.slane %v475, 7
        %v532 = vsel %vm483, %v531, %v474
        %v533 = vrot.slane %v476, 6
        %v534 = vsel %vm486, %v533, %v532
        %v535 = vrot.slane %v477, 5
        %v536 = vsel %vm489, %v535, %v534
        %v537 = vrot.slane %v478, 4
        %v538 = vsel %vm492, %v537, %v536
        %v539 = vrot.slane %v479, 3
        %v540 = vsel %vm495, %v539, %v538
        %v541 = vrot.slane %v480, 2
        %v542 = vsel %vm498, %v541, %v540
        %v543 = vrot.slane %v481, 1
        %v544 = vsel %vm501, %v543, %v542
        %v545 = vpack.c.b16 %v502, %v502
        %v546 = vpack.c.b8 %v545, %v545
        %v547 = vpack.c.b16 %v516, %v516
        %v548 = vpack.c.b8 %v547, %v547
        %v549 = vpack.c.b16 %v530, %v530
        %v550 = vpack.c.b8 %v549, %v549
        %v551 = vpack.c.b16 %v544, %v544
        %v552 = vpack.c.b8 %v551, %v551
        %v553 = vrot.slane %v546, 1
        %v554 = vrot.slane %v546, 2
        %v555 = vrot.slane %v546, 3
        %v556 = vrot.slane %v548, 1
        %v557 = vrot.slane %v548, 2
        %v558 = vrot.slane %v548, 3
        %v559 = vrot.slane %v550, 1
        %v560 = vrot.slane %v550, 2
        %v561 = vrot.slane %v550, 3
        %v562 = vrot.slane %v552, 1
        %v563 = vrot.slane %v552, 2
        %v564 = vrot.slane %v552, 3
        %vm565 = vcmask 1040384
        %v568 = vsel %vm565, %v546, %v553
        %v571 = vsel %vm486, %v554, %v555
        %vm572 = vcmask 1041408
        %v573 = vsel %vm572, %v568, %v571
        %v575 = vsel %vm483, %v546, %v553
        %v576 = vsel %vm489, %v554, %v555
        %vm577 = vcmask 1042433
        %v578 = vsel %vm577, %v575, %v576
        %v580 = vrot.slane %v578, 1
        %v583 = vsel %vm565, %v548, %v556
        %v586 = vsel %vm486, %v557, %v558
        %v587 = vsel %vm572, %v583, %v586
        %v589 = vsel %vm483, %v548, %v556
        %v590 = vsel %vm489, %v557, %v558
        %v591 = vsel %vm577, %v589, %v590
        %v593 = vrot.slane %v591, 1
        %v596 = vsel %vm565, %v550, %v559
        %v599 = vsel %vm486, %v560, %v561
        %v600 = vsel %vm572, %v596, %v599
        %v602 = vsel %vm483, %v550, %v559
        %v603 = vsel %vm489, %v560, %v561
        %v604 = vsel %vm577, %v602, %v603
        %v606 = vrot.slane %v604, 1
        %v609 = vsel %vm565, %v552, %v562
        %v612 = vsel %vm486, %v563, %v564
        %v613 = vsel %vm572, %v609, %v612
        %v615 = vsel %vm483, %v552, %v562
        %v616 = vsel %vm489, %v563, %v564
        %v617 = vsel %vm577, %v615, %v616
        %v619 = vrot.slane %v617, 1
        %vm620 = vnez %v573
        %vm621 = vnez %v580
        %vm622 = vnez %v587
        %vm623 = vnez %v593
        %vm624 = vnez %v600
        %vm625 = vnez %v606
        %vm626 = vnez %v613
        %vm627 = vnez %v619
        %v628 = vsel %vm620, 16843009, 0
        %v629 = vsel %vm621, 16843009, 0
        %v630 = vsel %vm622, 16843009, 0
        %v631 = vsel %vm623, 16843009, 0
        %v632 = vsel %vm624, 16843009, 0
        %v633 = vsel %vm625, 16843009, 0
        %v634 = vsel %vm626, 16843009, 0
        %v635 = vsel %vm627, 16843009, 0
        %v636 = vunpack.c.0.s8 %v628
        %v637 = vunpack.c.0.s8 %v629
        %v638 = vunpack.c.0.s8 %v630
        %v639 = vunpack.c.0.s8 %v631
        %v640 = vunpack.c.0.s8 %v632
        %v641 = vunpack.c.0.s8 %v633
        %v642 = vunpack.c.0.s8 %v634
        %v643 = vunpack.c.0.s8 %v635
        %vm644 = vcmp.ne.s32.totalorder %v636, 0
        %vm645 = vcmp.ne.s32.totalorder %v637, 0
        %vm646 = vcmp.ne.s32.totalorder %v638, 0
        %vm647 = vcmp.ne.s32.totalorder %v639, 0
        %vm648 = vcmp.ne.s32.totalorder %v640, 0
        %vm649 = vcmp.ne.s32.totalorder %v641, 0
        %vm650 = vcmp.ne.s32.totalorder %v642, 0
        %vm651 = vcmp.ne.s32.totalorder %v643, 0
        %v652 = vsel %vm644, 1, 0
        %v653 = vsel %vm645, 1, 0
        %v654 = vsel %vm646, 1, 0
        %v655 = vsel %vm647, 1, 0
        %v656 = vsel %vm648, 1, 0
        %v657 = vsel %vm649, 1, 0
        %v658 = vsel %vm650, 1, 0
        %v659 = vsel %vm651, 1, 0
        %660 = vst [vmem:[#allocation1] ss:$2 sm:$0xff] %v652
        %s661 = scalar_lea.vmem [#allocation1], 1
        %662 = vst [vmem:[%s661] ss:$2 sm:$0xff] %v653
        %s663 = scalar_lea.vmem [#allocation1], 16
        %664 = vst [vmem:[%s663] ss:$2 sm:$0xff] %v654
        %s665 = scalar_lea.vmem [#allocation1], 17
        %666 = vst [vmem:[%s665] ss:$2 sm:$0xff] %v655
        %s667 = scalar_lea.vmem [#allocation1], 32
        %668 = vst [vmem:[%s667] ss:$2 sm:$0xff] %v656
        %s669 = scalar_lea.vmem [#allocation1], 33
        %670 = vst [vmem:[%s669] ss:$2 sm:$0xff] %v657
        %s671 = scalar_lea.vmem [#allocation1], 48
        %672 = vst [vmem:[%s671] ss:$2 sm:$0xff] %v658
        %s673 = scalar_lea.vmem [#allocation1], 49
        %674 = vst [vmem:[%s673] ss:$2 sm:$0xff] %v659
        %v675 = vld.sshfl [vmem:[#allocation1] sm:$0xff pattern:$0x75316420]
        %v676 = vld.sshfl [vmem:[#allocation1 + $0x10] sm:$0xff pattern:$0x75316420]
        %v677 = vld.sshfl [vmem:[#allocation1 + $0x20] sm:$0xff pattern:$0x75316420]
        %v678 = vld.sshfl [vmem:[#allocation1 + $0x30] sm:$0xff pattern:$0x75316420]
        %vm679 = vcmp.ne.s32.totalorder %v675, 0
        %vm680 = vcmp.ne.s32.totalorder %v676, 0
        %vm681 = vcmp.ne.s32.totalorder %v677, 0
        %vm682 = vcmp.ne.s32.totalorder %v678, 0
        %v683 = vsel %vm679, 1, 0
        %v684 = vsel %vm680, 1, 0
        %v685 = vsel %vm681, 1, 0
        %v686 = vsel %vm682, 1, 0
        %v687 = vcvt.s32.f32 %v683
        %v688 = vcvt.s32.f32 %v684
        %v689 = vcvt.s32.f32 %v685
        %v690 = vcvt.s32.f32 %v686
        %691 = vadd.xlane.f32.xlu0 %v687
        %v692 = vpop.xlane.xlu0 %691
        %693 = vadd.xlane.f32.xlu0 %v688
        %v694 = vpop.xlane.xlu0 %693
        %695 = vadd.xlane.f32.xlu0 %v689
        %v696 = vpop.xlane.xlu0 %695
        %697 = vadd.xlane.f32.xlu0 %v690
        %v698 = vpop.xlane.xlu0 %697
        %699 = vst [vmem:[#allocation1] ss:$2 sm:$0xff] %v287
        %v700 = vld [vmem:[#allocation1] sm:$0xff]
        %s702 = scalar_lea.vmem [#allocation1], 16
        %703 = vst [vmem:[%s702] ss:$2 sm:$0xff] %v288
        %v704 = vld [vmem:[#allocation1 + $0x10] sm:$0xff]
        %s706 = scalar_lea.vmem [#allocation1], 32
        %707 = vst [vmem:[%s706] ss:$2 sm:$0xff] %v289
        %v708 = vld [vmem:[#allocation1 + $0x20] sm:$0xff]
        %s710 = scalar_lea.vmem [#allocation1], 48
        %711 = vst [vmem:[%s710] ss:$2 sm:$0xff] %v290
        %v712 = vld [vmem:[#allocation1 + $0x30] sm:$0xff]
        %714 = vst [vmem:[#allocation1] ss:$2 sm:$0xff] %v291
        %v715 = vld [vmem:[#allocation1] sm:$0xff]
        %717 = vst [vmem:[%s702] ss:$2 sm:$0xff] %v292
        %v718 = vld [vmem:[#allocation1 + $0x10] sm:$0xff]
        %720 = vst [vmem:[%s706] ss:$2 sm:$0xff] %v293
        %v721 = vld [vmem:[#allocation1 + $0x20] sm:$0xff]
        %723 = vst [vmem:[%s710] ss:$2 sm:$0xff] %v294
        %v724 = vld [vmem:[#allocation1 + $0x30] sm:$0xff]
        %726 = vst [vmem:[#allocation1] ss:$2 sm:$0xff] %v295
        %v727 = vld [vmem:[#allocation1] sm:$0xff]
        %729 = vst [vmem:[%s702] ss:$2 sm:$0xff] %v296
        %v730 = vld [vmem:[#allocation1 + $0x10] sm:$0xff]
        %732 = vst [vmem:[%s706] ss:$2 sm:$0xff] %v297
        %v733 = vld [vmem:[#allocation1 + $0x20] sm:$0xff]
        %735 = vst [vmem:[%s710] ss:$2 sm:$0xff] %v298
        %v736 = vld [vmem:[#allocation1 + $0x30] sm:$0xff]
        %738 = vst [vmem:[#allocation1] ss:$2 sm:$0xff] %v299
        %v739 = vld [vmem:[#allocation1] sm:$0xff]
        %741 = vst [vmem:[%s702] ss:$2 sm:$0xff] %v300
        %v742 = vld [vmem:[#allocation1 + $0x10] sm:$0xff]
        %744 = vst [vmem:[%s706] ss:$2 sm:$0xff] %v301
        %v745 = vld [vmem:[#allocation1 + $0x20] sm:$0xff]
        %747 = vst [vmem:[%s710] ss:$2 sm:$0xff] %v302
        %v748 = vld [vmem:[#allocation1 + $0x30] sm:$0xff]
        %750 = vst [vmem:[#allocation1] ss:$2 sm:$0xff] %v303
        %v751 = vld [vmem:[#allocation1] sm:$0xff]
        %753 = vst [vmem:[%s702] ss:$2 sm:$0xff] %v304
        %v754 = vld [vmem:[#allocation1 + $0x10] sm:$0xff]
        %756 = vst [vmem:[%s706] ss:$2 sm:$0xff] %v305
        %v757 = vld [vmem:[#allocation1 + $0x20] sm:$0xff]
        %759 = vst [vmem:[%s710] ss:$2 sm:$0xff] %v306
        %v760 = vld [vmem:[#allocation1 + $0x30] sm:$0xff]
        %762 = vst [vmem:[#allocation1] ss:$2 sm:$0xff] %v307
        %v763 = vld [vmem:[#allocation1] sm:$0xff]
        %765 = vst [vmem:[%s702] ss:$2 sm:$0xff] %v308
        %v766 = vld [vmem:[#allocation1 + $0x10] sm:$0xff]
        %768 = vst [vmem:[%s706] ss:$2 sm:$0xff] %v309
        %v769 = vld [vmem:[#allocation1 + $0x20] sm:$0xff]
        %771 = vst [vmem:[%s710] ss:$2 sm:$0xff] %v310
        %v772 = vld [vmem:[#allocation1 + $0x30] sm:$0xff]
        %774 = vst [vmem:[#allocation1] ss:$2 sm:$0xff] %v311
        %v775 = vld [vmem:[#allocation1] sm:$0xff]
        %777 = vst [vmem:[%s702] ss:$2 sm:$0xff] %v312
        %v778 = vld [vmem:[#allocation1 + $0x10] sm:$0xff]
        %780 = vst [vmem:[%s706] ss:$2 sm:$0xff] %v313
        %v781 = vld [vmem:[#allocation1 + $0x20] sm:$0xff]
        %783 = vst [vmem:[%s710] ss:$2 sm:$0xff] %v314
        %v784 = vld [vmem:[#allocation1 + $0x30] sm:$0xff]
        %786 = vst [vmem:[#allocation1] ss:$2 sm:$0xff] %v315
        %v787 = vld [vmem:[#allocation1] sm:$0xff]
        %789 = vst [vmem:[%s702] ss:$2 sm:$0xff] %v316
        %v790 = vld [vmem:[#allocation1 + $0x10] sm:$0xff]
        %792 = vst [vmem:[%s706] ss:$2 sm:$0xff] %v317
        %v793 = vld [vmem:[#allocation1 + $0x20] sm:$0xff]
        %795 = vst [vmem:[%s710] ss:$2 sm:$0xff] %v318
        %v796 = vld [vmem:[#allocation1 + $0x30] sm:$0xff]
        %v798 = vunpack.c.0.s8 %v700
        %v799 = vunpack.c.0.s8 %v704
        %v800 = vunpack.c.0.s8 %v708
        %v801 = vunpack.c.0.s8 %v712
        %v802 = vunpack.c.0.s8 %v715
        %v803 = vunpack.c.0.s8 %v718
        %v804 = vunpack.c.0.s8 %v721
        %v805 = vunpack.c.0.s8 %v724
        %v806 = vunpack.c.0.s8 %v727
        %v807 = vunpack.c.0.s8 %v730
        %v808 = vunpack.c.0.s8 %v733
        %v809 = vunpack.c.0.s8 %v736
        %v810 = vunpack.c.0.s8 %v739
        %v811 = vunpack.c.0.s8 %v742
        %v812 = vunpack.c.0.s8 %v745
        %v813 = vunpack.c.0.s8 %v748
        %v814 = vunpack.c.0.s8 %v751
        %v815 = vunpack.c.0.s8 %v754
        %v816 = vunpack.c.0.s8 %v757
        %v817 = vunpack.c.0.s8 %v760
        %v818 = vunpack.c.0.s8 %v763
        %v819 = vunpack.c.0.s8 %v766
        %v820 = vunpack.c.0.s8 %v769
        %v821 = vunpack.c.0.s8 %v772
        %v822 = vunpack.c.0.s8 %v775
        %v823 = vunpack.c.0.s8 %v778
        %v824 = vunpack.c.0.s8 %v781
        %v825 = vunpack.c.0.s8 %v784
        %v826 = vunpack.c.0.s8 %v787
        %v827 = vunpack.c.0.s8 %v790
        %v828 = vunpack.c.0.s8 %v793
        %v829 = vunpack.c.0.s8 %v796
        %v830 = vrot.slane %v799, 7
        %v831 = vsel %vm483, %v830, %v798
        %v832 = vrot.slane %v800, 6
        %v833 = vsel %vm486, %v832, %v831
        %v834 = vrot.slane %v801, 5
        %v835 = vsel %vm489, %v834, %v833
        %v836 = vrot.slane %v802, 4
        %v837 = vsel %vm492, %v836, %v835
        %v838 = vrot.slane %v803, 3
        %v839 = vsel %vm495, %v838, %v837
        %v840 = vrot.slane %v804, 2
        %v841 = vsel %vm498, %v840, %v839
        %v842 = vrot.slane %v805, 1
        %v843 = vsel %vm501, %v842, %v841
        %v844 = vrot.slane %v807, 7
        %v845 = vsel %vm483, %v844, %v806
        %v846 = vrot.slane %v808, 6
        %v847 = vsel %vm486, %v846, %v845
        %v848 = vrot.slane %v809, 5
        %v849 = vsel %vm489, %v848, %v847
        %v850 = vrot.slane %v810, 4
        %v851 = vsel %vm492, %v850, %v849
        %v852 = vrot.slane %v811, 3
        %v853 = vsel %vm495, %v852, %v851
        %v854 = vrot.slane %v812, 2
        %v855 = vsel %vm498, %v854, %v853
        %v856 = vrot.slane %v813, 1
        %v857 = vsel %vm501, %v856, %v855
        %v858 = vrot.slane %v815, 7
        %v859 = vsel %vm483, %v858, %v814
        %v860 = vrot.slane %v816, 6
        %v861 = vsel %vm486, %v860, %v859
        %v862 = vrot.slane %v817, 5
        %v863 = vsel %vm489, %v862, %v861
        %v864 = vrot.slane %v818, 4
        %v865 = vsel %vm492, %v864, %v863
        %v866 = vrot.slane %v819, 3
        %v867 = vsel %vm495, %v866, %v865
        %v868 = vrot.slane %v820, 2
        %v869 = vsel %vm498, %v868, %v867
        %v870 = vrot.slane %v821, 1
        %v871 = vsel %vm501, %v870, %v869
        %v872 = vrot.slane %v823, 7
        %v873 = vsel %vm483, %v872, %v822
        %v874 = vrot.slane %v824, 6
        %v875 = vsel %vm486, %v874, %v873
        %v876 = vrot.slane %v825, 5
        %v877 = vsel %vm489, %v876, %v875
        %v878 = vrot.slane %v826, 4
        %v879 = vsel %vm492, %v878, %v877
        %v880 = vrot.slane %v827, 3
        %v881 = vsel %vm495, %v880, %v879
        %v882 = vrot.slane %v828, 2
        %v883 = vsel %vm498, %v882, %v881
        %v884 = vrot.slane %v829, 1
        %v885 = vsel %vm501, %v884, %v883
        %v886 = vpack.c.b16 %v843, %v843
        %v887 = vpack.c.b8 %v886, %v886
        %v888 = vpack.c.b16 %v857, %v857
        %v889 = vpack.c.b8 %v888, %v888
        %v890 = vpack.c.b16 %v871, %v871
        %v891 = vpack.c.b8 %v890, %v890
        %v892 = vpack.c.b16 %v885, %v885
        %v893 = vpack.c.b8 %v892, %v892
        %v894 = vrot.slane %v887, 1
        %v895 = vrot.slane %v887, 2
        %v896 = vrot.slane %v887, 3
        %v897 = vrot.slane %v889, 1
        %v898 = vrot.slane %v889, 2
        %v899 = vrot.slane %v889, 3
        %v900 = vrot.slane %v891, 1
        %v901 = vrot.slane %v891, 2
        %v902 = vrot.slane %v891, 3
        %v903 = vrot.slane %v893, 1
        %v904 = vrot.slane %v893, 2
        %v905 = vrot.slane %v893, 3
        %v908 = vsel %vm565, %v887, %v894
        %v911 = vsel %vm486, %v895, %v896
        %v912 = vsel %vm572, %v908, %v911
        %v914 = vsel %vm483, %v887, %v894
        %v915 = vsel %vm489, %v895, %v896
        %v916 = vsel %vm577, %v914, %v915
        %v918 = vrot.slane %v916, 1
        %v921 = vsel %vm565, %v889, %v897
        %v924 = vsel %vm486, %v898, %v899
        %v925 = vsel %vm572, %v921, %v924
        %v927 = vsel %vm483, %v889, %v897
        %v928 = vsel %vm489, %v898, %v899
        %v929 = vsel %vm577, %v927, %v928
        %v931 = vrot.slane %v929, 1
        %v934 = vsel %vm565, %v891, %v900
        %v937 = vsel %vm486, %v901, %v902
        %v938 = vsel %vm572, %v934, %v937
        %v940 = vsel %vm483, %v891, %v900
        %v941 = vsel %vm489, %v901, %v902
        %v942 = vsel %vm577, %v940, %v941
        %v944 = vrot.slane %v942, 1
        %v947 = vsel %vm565, %v893, %v903
        %v950 = vsel %vm486, %v904, %v905
        %v951 = vsel %vm572, %v947, %v950
        %v953 = vsel %vm483, %v893, %v903
        %v954 = vsel %vm489, %v904, %v905
        %v955 = vsel %vm577, %v953, %v954
        %v957 = vrot.slane %v955, 1
        %vm958 = vnez %v912
        %vm959 = vnez %v918
        %vm960 = vnez %v925
        %vm961 = vnez %v931
        %vm962 = vnez %v938
        %vm963 = vnez %v944
        %vm964 = vnez %v951
        %vm965 = vnez %v957
        %v966 = vsel %vm958, 16843009, 0
        %v967 = vsel %vm959, 16843009, 0
        %v968 = vsel %vm960, 16843009, 0
        %v969 = vsel %vm961, 16843009, 0
        %v970 = vsel %vm962, 16843009, 0
        %v971 = vsel %vm963, 16843009, 0
        %v972 = vsel %vm964, 16843009, 0
        %v973 = vsel %vm965, 16843009, 0
        %v974 = vunpack.c.0.s8 %v966
        %v975 = vunpack.c.0.s8 %v967
        %v976 = vunpack.c.0.s8 %v968
        %v977 = vunpack.c.0.s8 %v969
        %v978 = vunpack.c.0.s8 %v970
        %v979 = vunpack.c.0.s8 %v971
        %v980 = vunpack.c.0.s8 %v972
        %v981 = vunpack.c.0.s8 %v973
        %vm982 = vcmp.ne.s32.totalorder %v974, 0
        %vm983 = vcmp.ne.s32.totalorder %v975, 0
        %vm984 = vcmp.ne.s32.totalorder %v976, 0
        %vm985 = vcmp.ne.s32.totalorder %v977, 0
        %vm986 = vcmp.ne.s32.totalorder %v978, 0
        %vm987 = vcmp.ne.s32.totalorder %v979, 0
        %vm988 = vcmp.ne.s32.totalorder %v980, 0
        %vm989 = vcmp.ne.s32.totalorder %v981, 0
        %v990 = vsel %vm982, 1, 0
        %v991 = vsel %vm983, 1, 0
        %v992 = vsel %vm984, 1, 0
        %v993 = vsel %vm985, 1, 0
        %v994 = vsel %vm986, 1, 0
        %v995 = vsel %vm987, 1, 0
        %v996 = vsel %vm988, 1, 0
        %v997 = vsel %vm989, 1, 0
        %998 = vst [vmem:[#allocation1] ss:$2 sm:$0xff] %v990
        %s999 = scalar_lea.vmem [#allocation1], 1
        %1000 = vst [vmem:[%s999] ss:$2 sm:$0xff] %v991
        %s1001 = scalar_lea.vmem [#allocation1], 16
        %1002 = vst [vmem:[%s1001] ss:$2 sm:$0xff] %v992
        %s1003 = scalar_lea.vmem [#allocation1], 17
        %1004 = vst [vmem:[%s1003] ss:$2 sm:$0xff] %v993
        %s1005 = scalar_lea.vmem [#allocation1], 32
        %1006 = vst [vmem:[%s1005] ss:$2 sm:$0xff] %v994
        %s1007 = scalar_lea.vmem [#allocation1], 33
        %1008 = vst [vmem:[%s1007] ss:$2 sm:$0xff] %v995
        %s1009 = scalar_lea.vmem [#allocation1], 48
        %1010 = vst [vmem:[%s1009] ss:$2 sm:$0xff] %v996
        %s1011 = scalar_lea.vmem [#allocation1], 49
        %1012 = vst [vmem:[%s1011] ss:$2 sm:$0xff] %v997
        %v1013 = vld.sshfl [vmem:[#allocation1] sm:$0xff pattern:$0x75316420]
        %v1014 = vld.sshfl [vmem:[#allocation1 + $0x10] sm:$0xff pattern:$0x75316420]
        %v1015 = vld.sshfl [vmem:[#allocation1 + $0x20] sm:$0xff pattern:$0x75316420]
        %v1016 = vld.sshfl [vmem:[#allocation1 + $0x30] sm:$0xff pattern:$0x75316420]
        %vm1017 = vcmp.ne.s32.totalorder %v1013, 0
        %vm1018 = vcmp.ne.s32.totalorder %v1014, 0
        %vm1019 = vcmp.ne.s32.totalorder %v1015, 0
        %vm1020 = vcmp.ne.s32.totalorder %v1016, 0
        %v1021 = vsel %vm1017, %v215, 0.0
        %v1022 = vsel %vm1018, %v216, 0.0
        %v1023 = vsel %vm1019, %v217, 0.0
        %v1024 = vsel %vm1020, %v218, 0.0
        %1025 = vadd.xlane.f32.xlu0 %v1021
        %v1026 = vpop.xlane.xlu0 %1025
        %1027 = vadd.xlane.f32.xlu0 %v1022
        %v1028 = vpop.xlane.xlu0 %1027
        %1029 = vadd.xlane.f32.xlu0 %v1023
        %v1030 = vpop.xlane.xlu0 %1029
        %1031 = vadd.xlane.f32.xlu0 %v1024
        %v1032 = vpop.xlane.xlu0 %1031
        %v1033 = vrcp.pop %v692
        %v1034 = vmul.f32 %v692, %v1033
        %v1035 = vsub.f32 1.0, %v1034
        %v1036 = vmul.f32 %v1033, %v1035
        %v1037 = vadd.f32 %v1033, %v1036
        %vm1038 = vweird.f32 %v692
        %vm1039 = vweird.f32 %v1033
        %vm1040 = vmor %vm1038, %vm1039
        %v1041 = vsel %vm1040, %v1033, %v1037
        %v1042 = vand.u32 2147483647, %v692
        %vm1043 = vcmp.eq.f32.partialorder %v1042, 8.507059e+37
        %v1044 = vand.u32 %v692, 2147483648
        %v1045 = vor.u32 1.1754944e-38, %v1044
        %v1046 = vsel %vm1043, %v1045, %v1041
        %v1047 = vmul.f32 %v1026, %v1046
        %v1048 = vrcp.pop %v694
        %v1049 = vmul.f32 %v694, %v1048
        %v1050 = vsub.f32 1.0, %v1049
        %v1051 = vmul.f32 %v1048, %v1050
        %v1052 = vadd.f32 %v1048, %v1051
        %vm1053 = vweird.f32 %v694
        %vm1054 = vweird.f32 %v1048
        %vm1055 = vmor %vm1053, %vm1054
        %v1056 = vsel %vm1055, %v1048, %v1052
        %v1057 = vand.u32 2147483647, %v694
        %vm1058 = vcmp.eq.f32.partialorder %v1057, 8.507059e+37
        %v1059 = vand.u32 %v694, 2147483648
        %v1060 = vor.u32 1.1754944e-38, %v1059
        %v1061 = vsel %vm1058, %v1060, %v1056
        %v1062 = vmul.f32 %v1028, %v1061
        %v1063 = vrcp.pop %v696
        %v1064 = vmul.f32 %v696, %v1063
        %v1065 = vsub.f32 1.0, %v1064
        %v1066 = vmul.f32 %v1063, %v1065
        %v1067 = vadd.f32 %v1063, %v1066
        %vm1068 = vweird.f32 %v696
        %vm1069 = vweird.f32 %v1063
        %vm1070 = vmor %vm1068, %vm1069
        %v1071 = vsel %vm1070, %v1063, %v1067
        %v1072 = vand.u32 2147483647, %v696
        %vm1073 = vcmp.eq.f32.partialorder %v1072, 8.507059e+37
        %v1074 = vand.u32 %v696, 2147483648
        %v1075 = vor.u32 1.1754944e-38, %v1074
        %v1076 = vsel %vm1073, %v1075, %v1071
        %v1077 = vmul.f32 %v1030, %v1076
        %v1078 = vrcp.pop %v698
        %v1079 = vmul.f32 %v698, %v1078
        %v1080 = vsub.f32 1.0, %v1079
        %v1081 = vmul.f32 %v1078, %v1080
        %v1082 = vadd.f32 %v1078, %v1081
        %vm1083 = vweird.f32 %v698
        %vm1084 = vweird.f32 %v1078
        %vm1085 = vmor %vm1083, %vm1084
        %v1086 = vsel %vm1085, %v1078, %v1082
        %v1087 = vand.u32 2147483647, %v698
        %vm1088 = vcmp.eq.f32.partialorder %v1087, 8.507059e+37
        %v1089 = vand.u32 %v698, 2147483648
        %v1090 = vor.u32 1.1754944e-38, %v1089
        %v1091 = vsel %vm1088, %v1090, %v1086
        %v1092 = vmul.f32 %v1032, %v1091
        %1093 = vst [vmem:[#allocation1] ss:$2 sm:$0xff] %v287
        %v1094 = vld [vmem:[#allocation1] sm:$0xff]
        %s1096 = scalar_lea.vmem [#allocation1], 16
        %1097 = vst [vmem:[%s1096] ss:$2 sm:$0xff] %v288
        %v1098 = vld [vmem:[#allocation1 + $0x10] sm:$0xff]
        %s1100 = scalar_lea.vmem [#allocation1], 32
        %1101 = vst [vmem:[%s1100] ss:$2 sm:$0xff] %v289
        %v1102 = vld [vmem:[#allocation1 + $0x20] sm:$0xff]
        %s1104 = scalar_lea.vmem [#allocation1], 48
        %1105 = vst [vmem:[%s1104] ss:$2 sm:$0xff] %v290
        %v1106 = vld [vmem:[#allocation1 + $0x30] sm:$0xff]
        %1108 = vst [vmem:[#allocation1] ss:$2 sm:$0xff] %v291
        %v1109 = vld [vmem:[#allocation1] sm:$0xff]
        %1111 = vst [vmem:[%s1096] ss:$2 sm:$0xff] %v292
        %v1112 = vld [vmem:[#allocation1 + $0x10] sm:$0xff]
        %1114 = vst [vmem:[%s1100] ss:$2 sm:$0xff] %v293
        %v1115 = vld [vmem:[#allocation1 + $0x20] sm:$0xff]
        %1117 = vst [vmem:[%s1104] ss:$2 sm:$0xff] %v294
        %v1118 = vld [vmem:[#allocation1 + $0x30] sm:$0xff]
        %1120 = vst [vmem:[#allocation1] ss:$2 sm:$0xff] %v295
        %v1121 = vld [vmem:[#allocation1] sm:$0xff]
        %1123 = vst [vmem:[%s1096] ss:$2 sm:$0xff] %v296
        %v1124 = vld [vmem:[#allocation1 + $0x10] sm:$0xff]
        %1126 = vst [vmem:[%s1100] ss:$2 sm:$0xff] %v297
        %v1127 = vld [vmem:[#allocation1 + $0x20] sm:$0xff]
        %1129 = vst [vmem:[%s1104] ss:$2 sm:$0xff] %v298
        %v1130 = vld [vmem:[#allocation1 + $0x30] sm:$0xff]
        %1132 = vst [vmem:[#allocation1] ss:$2 sm:$0xff] %v299
        %v1133 = vld [vmem:[#allocation1] sm:$0xff]
        %1135 = vst [vmem:[%s1096] ss:$2 sm:$0xff] %v300
        %v1136 = vld [vmem:[#allocation1 + $0x10] sm:$0xff]
        %1138 = vst [vmem:[%s1100] ss:$2 sm:$0xff] %v301
        %v1139 = vld [vmem:[#allocation1 + $0x20] sm:$0xff]
        %1141 = vst [vmem:[%s1104] ss:$2 sm:$0xff] %v302
        %v1142 = vld [vmem:[#allocation1 + $0x30] sm:$0xff]
        %1144 = vst [vmem:[#allocation1] ss:$2 sm:$0xff] %v303
        %v1145 = vld [vmem:[#allocation1] sm:$0xff]
        %1147 = vst [vmem:[%s1096] ss:$2 sm:$0xff] %v304
        %v1148 = vld [vmem:[#allocation1 + $0x10] sm:$0xff]
        %1150 = vst [vmem:[%s1100] ss:$2 sm:$0xff] %v305
        %v1151 = vld [vmem:[#allocation1 + $0x20] sm:$0xff]
        %1153 = vst [vmem:[%s1104] ss:$2 sm:$0xff] %v306
        %v1154 = vld [vmem:[#allocation1 + $0x30] sm:$0xff]
        %1156 = vst [vmem:[#allocation1] ss:$2 sm:$0xff] %v307
        %v1157 = vld [vmem:[#allocation1] sm:$0xff]
        %1159 = vst [vmem:[%s1096] ss:$2 sm:$0xff] %v308
        %v1160 = vld [vmem:[#allocation1 + $0x10] sm:$0xff]
        %1162 = vst [vmem:[%s1100] ss:$2 sm:$0xff] %v309
        %v1163 = vld [vmem:[#allocation1 + $0x20] sm:$0xff]
        %1165 = vst [vmem:[%s1104] ss:$2 sm:$0xff] %v310
        %v1166 = vld [vmem:[#allocation1 + $0x30] sm:$0xff]
        %1168 = vst [vmem:[#allocation1] ss:$2 sm:$0xff] %v311
        %v1169 = vld [vmem:[#allocation1] sm:$0xff]
        %1171 = vst [vmem:[%s1096] ss:$2 sm:$0xff] %v312
        %v1172 = vld [vmem:[#allocation1 + $0x10] sm:$0xff]
        %1174 = vst [vmem:[%s1100] ss:$2 sm:$0xff] %v313
        %v1175 = vld [vmem:[#allocation1 + $0x20] sm:$0xff]
        %1177 = vst [vmem:[%s1104] ss:$2 sm:$0xff] %v314
        %v1178 = vld [vmem:[#allocation1 + $0x30] sm:$0xff]
        %1180 = vst [vmem:[#allocation1] ss:$2 sm:$0xff] %v315
        %v1181 = vld [vmem:[#allocation1] sm:$0xff]
        %1183 = vst [vmem:[%s1096] ss:$2 sm:$0xff] %v316
        %v1184 = vld [vmem:[#allocation1 + $0x10] sm:$0xff]
        %1186 = vst [vmem:[%s1100] ss:$2 sm:$0xff] %v317
        %v1187 = vld [vmem:[#allocation1 + $0x20] sm:$0xff]
        %1189 = vst [vmem:[%s1104] ss:$2 sm:$0xff] %v318
        %v1190 = vld [vmem:[#allocation1 + $0x30] sm:$0xff]
        %v1192 = vunpack.c.0.s8 %v1094
        %v1193 = vunpack.c.0.s8 %v1098
        %v1194 = vunpack.c.0.s8 %v1102
        %v1195 = vunpack.c.0.s8 %v1106
        %v1196 = vunpack.c.0.s8 %v1109
        %v1197 = vunpack.c.0.s8 %v1112
        %v1198 = vunpack.c.0.s8 %v1115
        %v1199 = vunpack.c.0.s8 %v1118
        %v1200 = vunpack.c.0.s8 %v1121
        %v1201 = vunpack.c.0.s8 %v1124
        %v1202 = vunpack.c.0.s8 %v1127
        %v1203 = vunpack.c.0.s8 %v1130
        %v1204 = vunpack.c.0.s8 %v1133
        %v1205 = vunpack.c.0.s8 %v1136
        %v1206 = vunpack.c.0.s8 %v1139
        %v1207 = vunpack.c.0.s8 %v1142
        %v1208 = vunpack.c.0.s8 %v1145
        %v1209 = vunpack.c.0.s8 %v1148
        %v1210 = vunpack.c.0.s8 %v1151
        %v1211 = vunpack.c.0.s8 %v1154
        %v1212 = vunpack.c.0.s8 %v1157
        %v1213 = vunpack.c.0.s8 %v1160
        %v1214 = vunpack.c.0.s8 %v1163
        %v1215 = vunpack.c.0.s8 %v1166
        %v1216 = vunpack.c.0.s8 %v1169
        %v1217 = vunpack.c.0.s8 %v1172
        %v1218 = vunpack.c.0.s8 %v1175
        %v1219 = vunpack.c.0.s8 %v1178
        %v1220 = vunpack.c.0.s8 %v1181
        %v1221 = vunpack.c.0.s8 %v1184
        %v1222 = vunpack.c.0.s8 %v1187
        %v1223 = vunpack.c.0.s8 %v1190
        %v1224 = vrot.slane %v1193, 7
        %v1225 = vsel %vm483, %v1224, %v1192
        %v1226 = vrot.slane %v1194, 6
        %v1227 = vsel %vm486, %v1226, %v1225
        %v1228 = vrot.slane %v1195, 5
        %v1229 = vsel %vm489, %v1228, %v1227
        %v1230 = vrot.slane %v1196, 4
        %v1231 = vsel %vm492, %v1230, %v1229
        %v1232 = vrot.slane %v1197, 3
        %v1233 = vsel %vm495, %v1232, %v1231
        %v1234 = vrot.slane %v1198, 2
        %v1235 = vsel %vm498, %v1234, %v1233
        %v1236 = vrot.slane %v1199, 1
        %v1237 = vsel %vm501, %v1236, %v1235
        %v1238 = vrot.slane %v1201, 7
        %v1239 = vsel %vm483, %v1238, %v1200
        %v1240 = vrot.slane %v1202, 6
        %v1241 = vsel %vm486, %v1240, %v1239
        %v1242 = vrot.slane %v1203, 5
        %v1243 = vsel %vm489, %v1242, %v1241
        %v1244 = vrot.slane %v1204, 4
        %v1245 = vsel %vm492, %v1244, %v1243
        %v1246 = vrot.slane %v1205, 3
        %v1247 = vsel %vm495, %v1246, %v1245
        %v1248 = vrot.slane %v1206, 2
        %v1249 = vsel %vm498, %v1248, %v1247
        %v1250 = vrot.slane %v1207, 1
        %v1251 = vsel %vm501, %v1250, %v1249
        %v1252 = vrot.slane %v1209, 7
        %v1253 = vsel %vm483, %v1252, %v1208
        %v1254 = vrot.slane %v1210, 6
        %v1255 = vsel %vm486, %v1254, %v1253
        %v1256 = vrot.slane %v1211, 5
        %v1257 = vsel %vm489, %v1256, %v1255
        %v1258 = vrot.slane %v1212, 4
        %v1259 = vsel %vm492, %v1258, %v1257
        %v1260 = vrot.slane %v1213, 3
        %v1261 = vsel %vm495, %v1260, %v1259
        %v1262 = vrot.slane %v1214, 2
        %v1263 = vsel %vm498, %v1262, %v1261
        %v1264 = vrot.slane %v1215, 1
        %v1265 = vsel %vm501, %v1264, %v1263
        %v1266 = vrot.slane %v1217, 7
        %v1267 = vsel %vm483, %v1266, %v1216
        %v1268 = vrot.slane %v1218, 6
        %v1269 = vsel %vm486, %v1268, %v1267
        %v1270 = vrot.slane %v1219, 5
        %v1271 = vsel %vm489, %v1270, %v1269
        %v1272 = vrot.slane %v1220, 4
        %v1273 = vsel %vm492, %v1272, %v1271
        %v1274 = vrot.slane %v1221, 3
        %v1275 = vsel %vm495, %v1274, %v1273
        %v1276 = vrot.slane %v1222, 2
        %v1277 = vsel %vm498, %v1276, %v1275
        %v1278 = vrot.slane %v1223, 1
        %v1279 = vsel %vm501, %v1278, %v1277
        %v1280 = vpack.c.b16 %v1237, %v1237
        %v1281 = vpack.c.b8 %v1280, %v1280
        %v1282 = vpack.c.b16 %v1251, %v1251
        %v1283 = vpack.c.b8 %v1282, %v1282
        %v1284 = vpack.c.b16 %v1265, %v1265
        %v1285 = vpack.c.b8 %v1284, %v1284
        %v1286 = vpack.c.b16 %v1279, %v1279
        %v1287 = vpack.c.b8 %v1286, %v1286
        %v1288 = vrot.slane %v1281, 1
        %v1289 = vrot.slane %v1281, 2
        %v1290 = vrot.slane %v1281, 3
        %v1291 = vrot.slane %v1283, 1
        %v1292 = vrot.slane %v1283, 2
        %v1293 = vrot.slane %v1283, 3
        %v1294 = vrot.slane %v1285, 1
        %v1295 = vrot.slane %v1285, 2
        %v1296 = vrot.slane %v1285, 3
        %v1297 = vrot.slane %v1287, 1
        %v1298 = vrot.slane %v1287, 2
        %v1299 = vrot.slane %v1287, 3
        %v1302 = vsel %vm565, %v1281, %v1288
        %v1305 = vsel %vm486, %v1289, %v1290
        %v1306 = vsel %vm572, %v1302, %v1305
        %v1308 = vsel %vm483, %v1281, %v1288
        %v1309 = vsel %vm489, %v1289, %v1290
        %v1310 = vsel %vm577, %v1308, %v1309
        %v1312 = vrot.slane %v1310, 1
        %v1315 = vsel %vm565, %v1283, %v1291
        %v1318 = vsel %vm486, %v1292, %v1293
        %v1319 = vsel %vm572, %v1315, %v1318
        %v1321 = vsel %vm483, %v1283, %v1291
        %v1322 = vsel %vm489, %v1292, %v1293
        %v1323 = vsel %vm577, %v1321, %v1322
        %v1325 = vrot.slane %v1323, 1
        %v1328 = vsel %vm565, %v1285, %v1294
        %v1331 = vsel %vm486, %v1295, %v1296
        %v1332 = vsel %vm572, %v1328, %v1331
        %v1334 = vsel %vm483, %v1285, %v1294
        %v1335 = vsel %vm489, %v1295, %v1296
        %v1336 = vsel %vm577, %v1334, %v1335
        %v1338 = vrot.slane %v1336, 1
        %v1341 = vsel %vm565, %v1287, %v1297
        %v1344 = vsel %vm486, %v1298, %v1299
        %v1345 = vsel %vm572, %v1341, %v1344
        %v1347 = vsel %vm483, %v1287, %v1297
        %v1348 = vsel %vm489, %v1298, %v1299
        %v1349 = vsel %vm577, %v1347, %v1348
        %v1351 = vrot.slane %v1349, 1
        %vm1352 = vnez %v1306
        %vm1353 = vnez %v1312
        %vm1354 = vnez %v1319
        %vm1355 = vnez %v1325
        %vm1356 = vnez %v1332
        %vm1357 = vnez %v1338
        %vm1358 = vnez %v1345
        %vm1359 = vnez %v1351
        %v1360 = vsel %vm1352, 16843009, 0
        %v1361 = vsel %vm1353, 16843009, 0
        %v1362 = vsel %vm1354, 16843009, 0
        %v1363 = vsel %vm1355, 16843009, 0
        %v1364 = vsel %vm1356, 16843009, 0
        %v1365 = vsel %vm1357, 16843009, 0
        %v1366 = vsel %vm1358, 16843009, 0
        %v1367 = vsel %vm1359, 16843009, 0
        %v1368 = vunpack.c.0.s8 %v1360
        %v1369 = vunpack.c.0.s8 %v1361
        %v1370 = vunpack.c.0.s8 %v1362
        %v1371 = vunpack.c.0.s8 %v1363
        %v1372 = vunpack.c.0.s8 %v1364
        %v1373 = vunpack.c.0.s8 %v1365
        %v1374 = vunpack.c.0.s8 %v1366
        %v1375 = vunpack.c.0.s8 %v1367
        %vm1376 = vcmp.ne.s32.totalorder %v1368, 0
        %vm1377 = vcmp.ne.s32.totalorder %v1369, 0
        %vm1378 = vcmp.ne.s32.totalorder %v1370, 0
        %vm1379 = vcmp.ne.s32.totalorder %v1371, 0
        %vm1380 = vcmp.ne.s32.totalorder %v1372, 0
        %vm1381 = vcmp.ne.s32.totalorder %v1373, 0
        %vm1382 = vcmp.ne.s32.totalorder %v1374, 0
        %vm1383 = vcmp.ne.s32.totalorder %v1375, 0
        %v1384 = vsel %vm1376, 1, 0
        %v1385 = vsel %vm1377, 1, 0
        %v1386 = vsel %vm1378, 1, 0
        %v1387 = vsel %vm1379, 1, 0
        %v1388 = vsel %vm1380, 1, 0
        %v1389 = vsel %vm1381, 1, 0
        %v1390 = vsel %vm1382, 1, 0
        %v1391 = vsel %vm1383, 1, 0
        %1392 = vst [vmem:[#allocation1] ss:$2 sm:$0xff] %v1384
        %s1393 = scalar_lea.vmem [#allocation1], 1
        %1394 = vst [vmem:[%s1393] ss:$2 sm:$0xff] %v1385
        %s1395 = scalar_lea.vmem [#allocation1], 16
        %1396 = vst [vmem:[%s1395] ss:$2 sm:$0xff] %v1386
        %s1397 = scalar_lea.vmem [#allocation1], 17
        %1398 = vst [vmem:[%s1397] ss:$2 sm:$0xff] %v1387
        %s1399 = scalar_lea.vmem [#allocation1], 32
        %1400 = vst [vmem:[%s1399] ss:$2 sm:$0xff] %v1388
        %s1401 = scalar_lea.vmem [#allocation1], 33
        %1402 = vst [vmem:[%s1401] ss:$2 sm:$0xff] %v1389
        %s1403 = scalar_lea.vmem [#allocation1], 48
        %1404 = vst [vmem:[%s1403] ss:$2 sm:$0xff] %v1390
        %s1405 = scalar_lea.vmem [#allocation1], 49
        %1406 = vst [vmem:[%s1405] ss:$2 sm:$0xff] %v1391
        %v1407 = vld.sshfl [vmem:[#allocation1] sm:$0xff pattern:$0x75316420]
        %v1408 = vld.sshfl [vmem:[#allocation1 + $0x10] sm:$0xff pattern:$0x75316420]
        %v1409 = vld.sshfl [vmem:[#allocation1 + $0x20] sm:$0xff pattern:$0x75316420]
        %v1410 = vld.sshfl [vmem:[#allocation1 + $0x30] sm:$0xff pattern:$0x75316420]
        %vm1411 = vcmp.ne.s32.totalorder %v1407, 0
        %vm1412 = vcmp.ne.s32.totalorder %v1408, 0
        %vm1413 = vcmp.ne.s32.totalorder %v1409, 0
        %vm1414 = vcmp.ne.s32.totalorder %v1410, 0
        %v1415 = vsel %vm1411, %v215, -inf
        %v1416 = vsel %vm1412, %v216, -inf
        %v1417 = vsel %vm1413, %v217, -inf
        %v1418 = vsel %vm1414, %v218, -inf
        %1420 = vset.pattern.permute.xlu0 0
        %1421 = vperm.xlu0 %1420, %v219
        %v1422 = vpop.permute.xlu0 %1421
        %1425 = vset.pattern.permute.xlu0 0
        %1426 = vperm.xlu0 %1425, %v220
        %v1427 = vpop.permute.xlu0 %1426
        %1430 = vset.pattern.permute.xlu0 0
        %1431 = vperm.xlu0 %1430, %v221
        %v1432 = vpop.permute.xlu0 %1431
        %1435 = vset.pattern.permute.xlu0 0
        %1436 = vperm.xlu0 %1435, %v222
        %v1437 = vpop.permute.xlu0 %1436
        %v1439 = vadd.f32 %v1422, %v1415
        %v1440 = vadd.f32 %v1427, %v1416
        %v1441 = vadd.f32 %v1432, %v1417
        %v1442 = vadd.f32 %v1437, %v1418
        %v1443 = vsub.f32 %v1439, %v1047
        %v1444 = vsub.f32 %v1440, %v1062
        %v1445 = vsub.f32 %v1441, %v1077
        %v1446 = vsub.f32 %v1442, %v1092
        %1447 = vst [vmem:[%s194] sm:$0xff] %v1443
        %1448 = vst [vmem:[%s194 + $0x8] sm:$0xff] %v1444
        %1449 = vst [vmem:[%s194 + $0x10] sm:$0xff] %v1445
        %1450 = vst [vmem:[%s194 + $0x18] sm:$0xff] %v1446
        %s1451 = sand.u32 %s103, 1
        %s1452 = scalar_lea.sflag [#allocation3], %s1451
        %s1453 = sand.u32 %s103, 1
        %s1454 = smul.addr %s1453, 32
        %s1455 = scalar_lea.vmem [#allocation2], %s1454
        // Predicated region
        $region33: #{tpu_custom_call.1} parent=31 // pred_check
          %p1456 = pneg %p113
        $region34: #{tpu_custom_call.1} parent=31 // pred_check_branch
          %1458 = sbr.rel (%p1456) target = $region36
        $region35: #{tpu_custom_call.1} parent=31 // pred_region
          %s1459 = smul.u32 4, %s17
          %1461 = vsyncadd %s1452, 0
          %s1462 = smul.addr %s1459, 8
          %s1463 = scalar_lea.hbm %s3, %s1462
          %s1464 = sshll.u32 %s1455, 4
          %s1465 = int_to_ptr.vmem [resolvable:$true] %s1464
          %s1466 = sshll.u32 %s1463, 4
          %s1467 = int_to_ptr.hbm [resolvable:$true] %s1466
          %1472 = dma.vmem_to_hbm [thread:$0]  %s1465, 512, %s1467, %s1452, 128, 128, 8
        $region36: #{tpu_custom_call.1} parent=31 // pred_fallthru
          _
      $region32: #{tpu_custom_call.1} parent=5 // pred_fallthru
        _
      %p1473 = scmp.le.s32.totalorder 2, %s12
      // Predicated region
      $region37: #{tpu_custom_call.1} parent=5 // pred_check
        %p1474 = pneg %p1473
      $region38: #{tpu_custom_call.1} parent=5 // pred_check_branch
        %1476 = sbr.rel (%p1474) target = $region40
      $region39: #{tpu_custom_call.1} parent=5 // pred_region
        %s1477 = ssub.s32 %s12, 2
        // Predicated region
        $region41: #{tpu_custom_call.1} parent=39 // pred_check
          %p1478 = pneg %p119
        $region42: #{tpu_custom_call.1} parent=39 // pred_check_branch
          %1480 = sbr.rel (%p1478) target = $region44
        $region43: #{tpu_custom_call.1} parent=39 // pred_region
          %s1481 = sand.u32 %s104, 1
          %s1482 = scalar_lea.sflag [#allocation3], %s1481
          %s1483 = sand.u32 %s104, 1
          %s1484 = smul.addr %s1483, 32
          %s1485 = scalar_lea.vmem [#allocation2], %s1484
          %1487 = dma.done %s1482, 512
        $region44: #{tpu_custom_call.1} parent=39 // pred_fallthru
          _
      $region40: #{tpu_custom_call.1} parent=5 // pred_fallthru
        _
    $region6: #{tpu_custom_call.1} parent=1 // loop_footer
      %s16 = sadd.s32 1, %s12
    $region7: #{tpu_custom_call.1} parent=1 // loop_footer_branch
      %11 = sbr.rel target = $region3
    $region8: #{tpu_custom_call.1} parent=1 // loop_exit
      _
    %1488 = vsyncpa [#allocation3], 1
    %s1489 = scalar_lea.sflag [#allocation3], 1
    %1490 = vsyncpa %s1489, 1

</llo_original>
